<compile_context>
chip_gen: v5e
topology: v5e:2x2
jax: 0.10.0
libtpu: 0.0.40
codegen_flags: <defaults>
</compile_context>

<pallas_src>
import functools

import jax
import jax.numpy as jnp
from jax.experimental import pallas as pl
from jax.experimental import pallas as _pl_unused  # noqa: F401
from jax.experimental.pallas import tpu as pltpu  # noqa: F401  (used when scaling; see TODO)


# ---------------- hyperparameters (hp) ----------------
class HP:
    d_tout = 32          # BERT hidden size (768 in the real model)
    n_class = 1          # regression head (MOSI / MOSEI)
    dropout_prj = 0.1    # eval mode -> identity
    vocab_size = 64
    type_vocab_size = 2
    max_position = 16
    n_layers = 2
    n_heads = 4
    d_ff = 64
    seq_len = 8
    batch = 2


# ---------------- fused Pallas kernel ----------------
def _layer_norm(x, g, b, eps=1e-12):
    mu = jnp.mean(x, axis=-1, keepdims=True)
    var = jnp.mean(jnp.square(x - mu), axis=-1, keepdims=True)
    return (x - mu) * jax.lax.rsqrt(var + eps) * g + b


def _text_fused_kernel(
    emb_ref, mask_ref, misc_ref,
    wqkv_ref, wo_ref, w1_ref, w2_ref, lbias_ref, prjw_ref,
    out_ref,
    *, n_layers, n_heads, d_head, batch, seq_len, d_ff,
):
    D = n_heads * d_head
    BL = batch * seq_len
    f32 = jnp.float32

    misc = misc_ref[...]                                   # (8, D) packed small params

    # ---- embedding LayerNorm ----
    h = _layer_norm(emb_ref[...], misc[0:1, :], misc[1:2, :])          # (BL, D)

    # ---- mask bias hoisted ONCE (exact-shape adds inside the loops) ----
    bias_bqk = jnp.broadcast_to(mask_ref[...], (batch, seq_len, seq_len))

    for l in range(n_layers):
        lb = lbias_ref[l]                                              # (8, 3D)

        # -- fused QKV projection (scale already folded into Q columns) --
        qkv = jnp.dot(h, wqkv_ref[l], preferred_element_type=f32) + lb[0:1, :]
        qkv = qkv.reshape(batch, seq_len, 3 * D)      # layout-preserving leading split

        # -- attention: static head loop, single-batch-dim einsums --
        ctx_heads = []
        for hh in range(n_heads):
            c0 = hh * d_head
            qh = qkv[:, :, c0:c0 + d_head]                             # (B, L, dh)
            kh = qkv[:, :, D + c0:D + c0 + d_head]
            vh = qkv[:, :, 2 * D + c0:2 * D + c0 + d_head]
            s = jnp.einsum('bqd,bkd->bqk', qh, kh,
                           preferred_element_type=f32) + bias_bqk
            s = s - jnp.max(s, axis=-1, keepdims=True)
            p = jnp.exp(s)
            p = p * pl.reciprocal(jnp.sum(p, axis=-1, keepdims=True), approx=True)
            ctx_heads.append(jnp.einsum('bqk,bkd->bqd', p, vh,
                                        preferred_element_type=f32))
        ctx = jnp.concatenate(ctx_heads, axis=-1).reshape(BL, D)       # (BL, D)

        # -- output projection + residual + LN --
        attn_out = jnp.dot(ctx, wo_ref[l], preferred_element_type=f32) + lb[1:2, :D]
        h1 = _layer_norm(attn_out + h, lb[2:3, :D], lb[3:4, :D])

        # -- FFN + residual + LN --
        ff = jnp.dot(h1, w1_ref[l], preferred_element_type=f32) + lb[4:5, :d_ff]
        # TODO(synk): BERT uses exact erf-GELU; tanh-approx GELU is used here.
        ff = jax.nn.gelu(ff)
        ff = jnp.dot(ff, w2_ref[l], preferred_element_type=f32) + lb[5:6, :D]
        h = _layer_norm(ff + h1, lb[6:7, :D], lb[7:8, :D])

    # ---- CLS extraction: one reshape + row-0 slice ----
    cls = h.reshape(batch, seq_len, D)[:, 0, :]                        # (B, D)

    # ---- SubNet head: drop(identity) -> tanh(lin1) -> lin2 -> tanh -> lin3 ----
    y1 = jnp.tanh(jnp.dot(cls, prjw_ref[0], preferred_element_type=f32) + misc[2:3, :])
    fusion = jnp.dot(y1, prjw_ref[1], preferred_element_type=f32) + misc[3:4, :]
    y2 = jnp.tanh(fusion)
    y3 = jnp.dot(y2, prjw_ref[2], preferred_element_type=f32) + misc[4:5, :]  # padded preds

    # ---- packed lane-dense output (3, B, D) ----
    out_ref[0, :, :] = cls
    out_ref[1, :, :] = y2
    out_ref[2, :, :] = y3


# ---------------- deterministic parameter init (packed operands) ----------------
def init_params(key, hp):
    D, F, nL, H = hp.d_tout, hp.d_ff, hp.n_layers, hp.n_heads
    d_head = D // H
    keys = iter(jax.random.split(key, 16))

    def dense(shape):
        return jax.random.normal(next(keys), shape, jnp.float32) * 0.02

    # --- fused QKV weight; fold 1/sqrt(d_head) into the Q projection (W and b) ---
    scale = d_head ** -0.5
    wqkv = dense((nL, D, 3 * D))
    wqkv = wqkv.at[:, :, :D].multiply(scale)
    bqkv = jnp.zeros((nL, 3 * D), jnp.float32)
    bqkv = bqkv.at[:, :D].multiply(scale)

    # --- per-layer bias / LN slab: (nL, 8, 3D) ---
    def pad3(x):  # (nL, X) -> (nL, 1, 3D)
        return jnp.pad(x, ((0, 0), (0, 3 * D - x.shape[-1])))[:, None, :]

    bo = jnp.zeros((nL, D), jnp.float32)
    ln1g = jnp.ones((nL, D), jnp.float32)
    ln1b = jnp.zeros((nL, D), jnp.float32)
    b1 = jnp.zeros((nL, F), jnp.float32)
    b2 = jnp.zeros((nL, D), jnp.float32)
    ln2g = jnp.ones((nL, D), jnp.float32)
    ln2b = jnp.zeros((nL, D), jnp.float32)
    lbias = jnp.concatenate(
        [bqkv[:, None, :], pad3(bo), pad3(ln1g), pad3(ln1b),
         pad3(b1), pad3(b2), pad3(ln2g), pad3(ln2b)], axis=1).astype(jnp.float32)

    # --- misc slab (8, D): [emb_ln_g, emb_ln_b, prj_b1, prj_b2, prj_b3(pad), 0, 0, 0] ---
    misc = jnp.zeros((8, D), jnp.float32).at[0].set(1.0)

    # --- SubNet weight stack (3, D, D); w3 columns beyond n_class are zero ---
    prj_w3 = jnp.pad(dense((D, hp.n_class)), ((0, 0), (0, D - hp.n_class)))
    prj_w = jnp.stack([dense((D, D)), dense((D, D)), prj_w3], axis=0)

    return {
        "word_emb": dense((hp.vocab_size, D)),
        "pos_emb": dense((hp.max_position, D)),
        "type_emb": dense((hp.type_vocab_size, D)),
        "misc": misc,
        "wqkv": wqkv,
        "wo": dense((nL, D, D)),
        "w1": dense((nL, D, F)),
        "w2": dense((nL, F, D)),
        "lbias": lbias,
        "prj_w": prj_w,
    }


# ---------------- forward pass ----------------
def text_forward(params, hp, sentences, bert_sent, bert_sent_type, bert_sent_mask, y=None):
    # `sentences` (glove ids) are unused on the BERT path, matching the reference.
    del sentences, y
    B, L = bert_sent.shape
    D = hp.d_tout

    # Embedding gathers are data-dependent -> host-side glue; everything
    # downstream is ONE fused Pallas kernel (all intermediates stay in VMEM).
    emb = (jnp.take(params["word_emb"], bert_sent, axis=0)
           + jnp.take(params["type_emb"], bert_sent_type, axis=0)
           + params["pos_emb"][None, :L, :]).reshape(B * L, D).astype(jnp.float32)
    mask_bias = ((1.0 - bert_sent_mask.astype(jnp.float32)) * -1e9).reshape(B, 1, L)

    kernel = functools.partial(
        _text_fused_kernel,
        n_layers=hp.n_layers, n_heads=hp.n_heads, d_head=D // hp.n_heads,
        batch=B, seq_len=L, d_ff=hp.d_ff)

    # Whole-array (un-gridded) pallas_call: 9 packed operands, all tiny, all
    # resident in VMEM for the entire fused forward.
    # TODO(synk): at real bert-base sizes, stream per-layer weights in bf16 over
    # an "arbitrary" layer grid axis with pipeline_mode=pl.Buffered(2), put a
    # "parallel" token axis first (megacore / v7x 2-TC split), set
    # pltpu.CompilerParams(vmem_limit_bytes~=48MB) for v7x's 64 MiB VMEM, and
    # keep LayerNorm/softmax element-wise math in f32 (v5e has no bf16 VPU/EUP).
    out = pl.pallas_call(
        kernel,
        out_shape=jax.ShapeDtypeStruct((3, B, D), jnp.float32),
    )(emb, mask_bias, params["misc"], params["wqkv"], params["wo"],
      params["w1"], params["w2"], params["lbias"], params["prj_w"])

    text_embedding = out[0]
    text_out = out[1]
    preds = out[2][:, :hp.n_class]
    return text_embedding, text_out, preds


if __name__ == "__main__":
    hp = HP()
    key = jax.random.PRNGKey(0)
    kp, k1, k2 = jax.random.split(key, 3)
    params = init_params(kp, hp)

    B, L = hp.batch, hp.seq_len
    # glove-id sentences come in (seq, batch) from the torch pipeline; unused by BERT path
    sentences = jax.random.randint(k1, (L, B), 0, hp.vocab_size, dtype=jnp.int32)
    bert_sent = jax.random.randint(k2, (B, L), 0, hp.vocab_size, dtype=jnp.int32)
    bert_sent_type = jnp.zeros((B, L), jnp.int32)
    lens = jnp.array([L, L - 2], jnp.int32)
    bert_sent_mask = (jnp.arange(L)[None, :] < lens[:, None]).astype(jnp.float32)

    fwd = jax.jit(functools.partial(text_forward, params, hp))
    text_embedding, text_out, preds = fwd(sentences, bert_sent, bert_sent_type, bert_sent_mask)
    jax.block_until_ready((text_embedding, text_out, preds))

    assert text_embedding.shape == (B, hp.d_tout)
    assert text_out.shape == (B, hp.d_tout)
    assert preds.shape == (B, hp.n_class)
    assert bool(jnp.all(jnp.isfinite(text_embedding)))
    assert bool(jnp.all(jnp.isfinite(text_out)))
    assert bool(jnp.all(jnp.isfinite(preds)))
    print("KERNEL_OK")
</pallas_src>

<mosaic_0001>
module attributes {stable_mosaic.version = 11 : i64} {
  func.func @_text_fused_kernel(%arg0: memref<16x32xf32, #tpu.memory_space<vmem>>, %arg1: memref<2x1x8xf32, #tpu.memory_space<vmem>>, %arg2: memref<8x32xf32, #tpu.memory_space<vmem>>, %arg3: memref<2x32x96xf32, #tpu.memory_space<vmem>>, %arg4: memref<2x32x32xf32, #tpu.memory_space<vmem>>, %arg5: memref<2x32x64xf32, #tpu.memory_space<vmem>>, %arg6: memref<2x64x32xf32, #tpu.memory_space<vmem>>, %arg7: memref<2x8x96xf32, #tpu.memory_space<vmem>>, %arg8: memref<3x32x32xf32, #tpu.memory_space<vmem>>, %arg9: memref<3x2x32xf32, #tpu.memory_space<vmem>>) attributes {dimension_semantics = [], scalar_prefetch = 0 : i64, scratch_operands = 0 : i64, tpu.core_type = #tpu.core_type<tc>} {
    %c0 = arith.constant 0 : index
    %c0_0 = arith.constant 0 : index
    %0 = vector.load %arg2[%c0, %c0_0] : memref<8x32xf32, #tpu.memory_space<vmem>>, vector<8x32xf32>
    %c0_1 = arith.constant 0 : index
    %c0_2 = arith.constant 0 : index
    %1 = vector.load %arg0[%c0_1, %c0_2] : memref<16x32xf32, #tpu.memory_space<vmem>>, vector<16x32xf32>
    %2 = vector.extract_strided_slice %0 {offsets = [0, 0], sizes = [1, 32], strides = [1, 1]} : vector<8x32xf32> to vector<1x32xf32>
    %3 = vector.extract_strided_slice %0 {offsets = [1, 0], sizes = [1, 32], strides = [1, 1]} : vector<8x32xf32> to vector<1x32xf32>
    %cst = arith.constant dense<0.000000e+00> : vector<16xf32>
    %4 = vector.multi_reduction <add>, %1, %cst [1] : vector<16x32xf32> to vector<16xf32>
    %5 = vector.shape_cast %4 : vector<16xf32> to vector<16x1xf32>
    %cst_3 = arith.constant 3.200000e+01 : f32
    %6 = vector.broadcast %cst_3 : f32 to vector<16x1xf32>
    %7 = arith.divf %5, %6 : vector<16x1xf32>
    %8 = vector.broadcast %7 : vector<16x1xf32> to vector<16x32xf32>
    %9 = arith.subf %1, %8 : vector<16x32xf32>
    %10 = arith.mulf %9, %9 : vector<16x32xf32>
    %cst_4 = arith.constant dense<0.000000e+00> : vector<16xf32>
    %11 = vector.multi_reduction <add>, %10, %cst_4 [1] : vector<16x32xf32> to vector<16xf32>
    %12 = vector.shape_cast %11 : vector<16xf32> to vector<16x1xf32>
    %cst_5 = arith.constant 3.200000e+01 : f32
    %13 = vector.broadcast %cst_5 : f32 to vector<16x1xf32>
    %14 = arith.divf %12, %13 : vector<16x1xf32>
    %15 = vector.broadcast %7 : vector<16x1xf32> to vector<16x32xf32>
    %16 = arith.subf %1, %15 : vector<16x32xf32>
    %cst_6 = arith.constant 9.99999996E-13 : f32
    %17 = vector.broadcast %cst_6 : f32 to vector<16x1xf32>
    %18 = arith.addf %14, %17 : vector<16x1xf32>
    %19 = math.rsqrt %18 : vector<16x1xf32>
    %20 = vector.broadcast %19 : vector<16x1xf32> to vector<16x32xf32>
    %21 = arith.mulf %16, %20 : vector<16x32xf32>
    %22 = vector.broadcast %2 : vector<1x32xf32> to vector<16x32xf32>
    %23 = arith.mulf %21, %22 : vector<16x32xf32>
    %24 = vector.broadcast %3 : vector<1x32xf32> to vector<16x32xf32>
    %25 = arith.addf %23, %24 : vector<16x32xf32>
    %c0_7 = arith.constant 0 : index
    %c0_8 = arith.constant 0 : index
    %c0_9 = arith.constant 0 : index
    %26 = vector.load %arg1[%c0_7, %c0_8, %c0_9] : memref<2x1x8xf32, #tpu.memory_space<vmem>>, vector<2x1x8xf32>
    %27 = vector.shape_cast %26 : vector<2x1x8xf32> to vector<2x1x8xf32>
    %28 = vector.broadcast %27 : vector<2x1x8xf32> to vector<2x8x8xf32>
    %c0_10 = arith.constant 0 : index
    %c0_11 = arith.constant 0 : index
    %c0_12 = arith.constant 0 : index
    %29 = vector.load %arg7[%c0_10, %c0_11, %c0_12] : memref<2x8x96xf32, #tpu.memory_space<vmem>>, vector<1x8x96xf32>
    %30 = vector.shape_cast %29 : vector<1x8x96xf32> to vector<8x96xf32>
    %c0_13 = arith.constant 0 : index
    %c0_14 = arith.constant 0 : index
    %c0_15 = arith.constant 0 : index
    %31 = vector.load %arg3[%c0_13, %c0_14, %c0_15] : memref<2x32x96xf32, #tpu.memory_space<vmem>>, vector<1x32x96xf32>
    %32 = vector.shape_cast %31 : vector<1x32x96xf32> to vector<32x96xf32>
    %cst_16 = arith.constant dense<0.000000e+00> : vector<16x96xf32>
    %33 = tpu.matmul %25, %32, %cst_16 {dimension_numbers = #tpu.dot_dimension_numbers<[1], [0], [0], [1], [0, 0, 1, 1], [], []>} : vector<16x32xf32>, vector<32x96xf32>, vector<16x96xf32> -> vector<16x96xf32>
    %34 = vector.extract_strided_slice %30 {offsets = [0, 0], sizes = [1, 96], strides = [1, 1]} : vector<8x96xf32> to vector<1x96xf32>
    %35 = vector.broadcast %34 : vector<1x96xf32> to vector<16x96xf32>
    %36 = arith.addf %33, %35 : vector<16x96xf32>
    %37 = vector.shape_cast %36 : vector<16x96xf32> to vector<2x8x96xf32>
    %38 = vector.extract_strided_slice %37 {offsets = [0, 0, 0], sizes = [2, 8, 8], strides = [1, 1, 1]} : vector<2x8x96xf32> to vector<2x8x8xf32>
    %39 = vector.extract_strided_slice %37 {offsets = [0, 0, 32], sizes = [2, 8, 8], strides = [1, 1, 1]} : vector<2x8x96xf32> to vector<2x8x8xf32>
    %40 = vector.extract_strided_slice %37 {offsets = [0, 0, 64], sizes = [2, 8, 8], strides = [1, 1, 1]} : vector<2x8x96xf32> to vector<2x8x8xf32>
    "tpu.trace_start"() <{level = 10 : i32, message = "bqd,bkd->bqk"}> : () -> ()
    %cst_17 = arith.constant dense<0.000000e+00> : vector<2x8x8xf32>
    %41 = tpu.matmul %38, %39, %cst_17 {dimension_numbers = #tpu.dot_dimension_numbers<[2], [2], [1], [1], [0, 0, 0, 1, 1, 1], [0], [0]>} : vector<2x8x8xf32>, vector<2x8x8xf32>, vector<2x8x8xf32> -> vector<2x8x8xf32>
    "tpu.trace_stop"() : () -> ()
    %42 = arith.addf %41, %28 : vector<2x8x8xf32>
    %cst_18 = arith.constant dense<0xFF800000> : vector<2x8xf32>
    %43 = vector.multi_reduction <maximumf>, %42, %cst_18 [2] : vector<2x8x8xf32> to vector<2x8xf32>
    %44 = vector.shape_cast %43 : vector<2x8xf32> to vector<2x8x1xf32>
    %45 = vector.broadcast %44 : vector<2x8x1xf32> to vector<2x8x8xf32>
    %46 = arith.subf %42, %45 : vector<2x8x8xf32>
    %47 = math.exp %46 : vector<2x8x8xf32>
    %cst_19 = arith.constant dense<0.000000e+00> : vector<2x8xf32>
    %48 = vector.multi_reduction <add>, %47, %cst_19 [2] : vector<2x8x8xf32> to vector<2x8xf32>
    %49 = vector.shape_cast %48 : vector<2x8xf32> to vector<2x8x1xf32>
    %50 = tpu.reciprocal %49 {approx = true} : vector<2x8x1xf32> -> vector<2x8x1xf32>
    %51 = vector.broadcast %50 : vector<2x8x1xf32> to vector<2x8x8xf32>
    %52 = arith.mulf %47, %51 : vector<2x8x8xf32>
    "tpu.trace_start"() <{level = 10 : i32, message = "bqk,bkd->bqd"}> : () -> ()
    %cst_20 = arith.constant dense<0.000000e+00> : vector<2x8x8xf32>
    %53 = tpu.matmul %52, %40, %cst_20 {dimension_numbers = #tpu.dot_dimension_numbers<[2], [1], [1], [2], [0, 0, 0, 1, 1, 2], [0], [0]>} : vector<2x8x8xf32>, vector<2x8x8xf32>, vector<2x8x8xf32> -> vector<2x8x8xf32>
    "tpu.trace_stop"() : () -> ()
    %54 = vector.extract_strided_slice %37 {offsets = [0, 0, 8], sizes = [2, 8, 8], strides = [1, 1, 1]} : vector<2x8x96xf32> to vector<2x8x8xf32>
    %55 = vector.extract_strided_slice %37 {offsets = [0, 0, 40], sizes = [2, 8, 8], strides = [1, 1, 1]} : vector<2x8x96xf32> to vector<2x8x8xf32>
    %56 = vector.extract_strided_slice %37 {offsets = [0, 0, 72], sizes = [2, 8, 8], strides = [1, 1, 1]} : vector<2x8x96xf32> to vector<2x8x8xf32>
    "tpu.trace_start"() <{level = 10 : i32, message = "bqd,bkd->bqk"}> : () -> ()
    %cst_21 = arith.constant dense<0.000000e+00> : vector<2x8x8xf32>
    %57 = tpu.matmul %54, %55, %cst_21 {dimension_numbers = #tpu.dot_dimension_numbers<[2], [2], [1], [1], [0, 0, 0, 1, 1, 1], [0], [0]>} : vector<2x8x8xf32>, vector<2x8x8xf32>, vector<2x8x8xf32> -> vector<2x8x8xf32>
    "tpu.trace_stop"() : () -> ()
    %58 = arith.addf %57, %28 : vector<2x8x8xf32>
    %cst_22 = arith.constant dense<0xFF800000> : vector<2x8xf32>
    %59 = vector.multi_reduction <maximumf>, %58, %cst_22 [2] : vector<2x8x8xf32> to vector<2x8xf32>
    %60 = vector.shape_cast %59 : vector<2x8xf32> to vector<2x8x1xf32>
    %61 = vector.broadcast %60 : vector<2x8x1xf32> to vector<2x8x8xf32>
    %62 = arith.subf %58, %61 : vector<2x8x8xf32>
    %63 = math.exp %62 : vector<2x8x8xf32>
    %cst_23 = arith.constant dense<0.000000e+00> : vector<2x8xf32>
    %64 = vector.multi_reduction <add>, %63, %cst_23 [2] : vector<2x8x8xf32> to vector<2x8xf32>
    %65 = vector.shape_cast %64 : vector<2x8xf32> to vector<2x8x1xf32>
    %66 = tpu.reciprocal %65 {approx = true} : vector<2x8x1xf32> -> vector<2x8x1xf32>
    %67 = vector.broadcast %66 : vector<2x8x1xf32> to vector<2x8x8xf32>
    %68 = arith.mulf %63, %67 : vector<2x8x8xf32>
    "tpu.trace_start"() <{level = 10 : i32, message = "bqk,bkd->bqd"}> : () -> ()
    %cst_24 = arith.constant dense<0.000000e+00> : vector<2x8x8xf32>
    %69 = tpu.matmul %68, %56, %cst_24 {dimension_numbers = #tpu.dot_dimension_numbers<[2], [1], [1], [2], [0, 0, 0, 1, 1, 2], [0], [0]>} : vector<2x8x8xf32>, vector<2x8x8xf32>, vector<2x8x8xf32> -> vector<2x8x8xf32>
    "tpu.trace_stop"() : () -> ()
    %70 = vector.extract_strided_slice %37 {offsets = [0, 0, 16], sizes = [2, 8, 8], strides = [1, 1, 1]} : vector<2x8x96xf32> to vector<2x8x8xf32>
    %71 = vector.extract_strided_slice %37 {offsets = [0, 0, 48], sizes = [2, 8, 8], strides = [1, 1, 1]} : vector<2x8x96xf32> to vector<2x8x8xf32>
    %72 = vector.extract_strided_slice %37 {offsets = [0, 0, 80], sizes = [2, 8, 8], strides = [1, 1, 1]} : vector<2x8x96xf32> to vector<2x8x8xf32>
    "tpu.trace_start"() <{level = 10 : i32, message = "bqd,bkd->bqk"}> : () -> ()
    %cst_25 = arith.constant dense<0.000000e+00> : vector<2x8x8xf32>
    %73 = tpu.matmul %70, %71, %cst_25 {dimension_numbers = #tpu.dot_dimension_numbers<[2], [2], [1], [1], [0, 0, 0, 1, 1, 1], [0], [0]>} : vector<2x8x8xf32>, vector<2x8x8xf32>, vector<2x8x8xf32> -> vector<2x8x8xf32>
    "tpu.trace_stop"() : () -> ()
    %74 = arith.addf %73, %28 : vector<2x8x8xf32>
    %cst_26 = arith.constant dense<0xFF800000> : vector<2x8xf32>
    %75 = vector.multi_reduction <maximumf>, %74, %cst_26 [2] : vector<2x8x8xf32> to vector<2x8xf32>
    %76 = vector.shape_cast %75 : vector<2x8xf32> to vector<2x8x1xf32>
    %77 = vector.broadcast %76 : vector<2x8x1xf32> to vector<2x8x8xf32>
    %78 = arith.subf %74, %77 : vector<2x8x8xf32>
    %79 = math.exp %78 : vector<2x8x8xf32>
    %cst_27 = arith.constant dense<0.000000e+00> : vector<2x8xf32>
    %80 = vector.multi_reduction <add>, %79, %cst_27 [2] : vector<2x8x8xf32> to vector<2x8xf32>
    %81 = vector.shape_cast %80 : vector<2x8xf32> to vector<2x8x1xf32>
    %82 = tpu.reciprocal %81 {approx = true} : vector<2x8x1xf32> -> vector<2x8x1xf32>
    %83 = vector.broadcast %82 : vector<2x8x1xf32> to vector<2x8x8xf32>
    %84 = arith.mulf %79, %83 : vector<2x8x8xf32>
    "tpu.trace_start"() <{level = 10 : i32, message = "bqk,bkd->bqd"}> : () -> ()
    %cst_28 = arith.constant dense<0.000000e+00> : vector<2x8x8xf32>
    %85 = tpu.matmul %84, %72, %cst_28 {dimension_numbers = #tpu.dot_dimension_numbers<[2], [1], [1], [2], [0, 0, 0, 1, 1, 2], [0], [0]>} : vector<2x8x8xf32>, vector<2x8x8xf32>, vector<2x8x8xf32> -> vector<2x8x8xf32>
    "tpu.trace_stop"() : () -> ()
    %86 = vector.extract_strided_slice %37 {offsets = [0, 0, 24], sizes = [2, 8, 8], strides = [1, 1, 1]} : vector<2x8x96xf32> to vector<2x8x8xf32>
    %87 = vector.extract_strided_slice %37 {offsets = [0, 0, 56], sizes = [2, 8, 8], strides = [1, 1, 1]} : vector<2x8x96xf32> to vector<2x8x8xf32>
    %88 = vector.extract_strided_slice %37 {offsets = [0, 0, 88], sizes = [2, 8, 8], strides = [1, 1, 1]} : vector<2x8x96xf32> to vector<2x8x8xf32>
    "tpu.trace_start"() <{level = 10 : i32, message = "bqd,bkd->bqk"}> : () -> ()
    %cst_29 = arith.constant dense<0.000000e+00> : vector<2x8x8xf32>
    %89 = tpu.matmul %86, %87, %cst_29 {dimension_numbers = #tpu.dot_dimension_numbers<[2], [2], [1], [1], [0, 0, 0, 1, 1, 1], [0], [0]>} : vector<2x8x8xf32>, vector<2x8x8xf32>, vector<2x8x8xf32> -> vector<2x8x8xf32>
    "tpu.trace_stop"() : () -> ()
    %90 = arith.addf %89, %28 : vector<2x8x8xf32>
    %cst_30 = arith.constant dense<0xFF800000> : vector<2x8xf32>
    %91 = vector.multi_reduction <maximumf>, %90, %cst_30 [2] : vector<2x8x8xf32> to vector<2x8xf32>
    %92 = vector.shape_cast %91 : vector<2x8xf32> to vector<2x8x1xf32>
    %93 = vector.broadcast %92 : vector<2x8x1xf32> to vector<2x8x8xf32>
    %94 = arith.subf %90, %93 : vector<2x8x8xf32>
    %95 = math.exp %94 : vector<2x8x8xf32>
    %cst_31 = arith.constant dense<0.000000e+00> : vector<2x8xf32>
    %96 = vector.multi_reduction <add>, %95, %cst_31 [2] : vector<2x8x8xf32> to vector<2x8xf32>
    %97 = vector.shape_cast %96 : vector<2x8xf32> to vector<2x8x1xf32>
    %98 = tpu.reciprocal %97 {approx = true} : vector<2x8x1xf32> -> vector<2x8x1xf32>
    %99 = vector.broadcast %98 : vector<2x8x1xf32> to vector<2x8x8xf32>
    %100 = arith.mulf %95, %99 : vector<2x8x8xf32>
    "tpu.trace_start"() <{level = 10 : i32, message = "bqk,bkd->bqd"}> : () -> ()
    %cst_32 = arith.constant dense<0.000000e+00> : vector<2x8x8xf32>
    %101 = tpu.matmul %100, %88, %cst_32 {dimension_numbers = #tpu.dot_dimension_numbers<[2], [1], [1], [2], [0, 0, 0, 1, 1, 2], [0], [0]>} : vector<2x8x8xf32>, vector<2x8x8xf32>, vector<2x8x8xf32> -> vector<2x8x8xf32>
    "tpu.trace_stop"() : () -> ()
    %102 = tpu.concatenate %53, %69, %85, %101 in 2 : vector<2x8x8xf32>, vector<2x8x8xf32>, vector<2x8x8xf32>, vector<2x8x8xf32> -> vector<2x8x32xf32>
    %103 = vector.shape_cast %102 : vector<2x8x32xf32> to vector<16x32xf32>
    %c0_33 = arith.constant 0 : index
    %c0_34 = arith.constant 0 : index
    %c0_35 = arith.constant 0 : index
    %104 = vector.load %arg4[%c0_33, %c0_34, %c0_35] : memref<2x32x32xf32, #tpu.memory_space<vmem>>, vector<1x32x32xf32>
    %105 = vector.shape_cast %104 : vector<1x32x32xf32> to vector<32x32xf32>
    %cst_36 = arith.constant dense<0.000000e+00> : vector<16x32xf32>
    %106 = tpu.matmul %103, %105, %cst_36 {dimension_numbers = #tpu.dot_dimension_numbers<[1], [0], [0], [1], [0, 0, 1, 1], [], []>} : vector<16x32xf32>, vector<32x32xf32>, vector<16x32xf32> -> vector<16x32xf32>
    %107 = vector.extract_strided_slice %30 {offsets = [1, 0], sizes = [1, 32], strides = [1, 1]} : vector<8x96xf32> to vector<1x32xf32>
    %108 = vector.broadcast %107 : vector<1x32xf32> to vector<16x32xf32>
    %109 = arith.addf %106, %108 : vector<16x32xf32>
    %110 = arith.addf %109, %25 : vector<16x32xf32>
    %111 = vector.extract_strided_slice %30 {offsets = [2, 0], sizes = [1, 32], strides = [1, 1]} : vector<8x96xf32> to vector<1x32xf32>
    %112 = vector.extract_strided_slice %30 {offsets = [3, 0], sizes = [1, 32], strides = [1, 1]} : vector<8x96xf32> to vector<1x32xf32>
    %cst_37 = arith.constant dense<0.000000e+00> : vector<16xf32>
    %113 = vector.multi_reduction <add>, %110, %cst_37 [1] : vector<16x32xf32> to vector<16xf32>
    %114 = vector.shape_cast %113 : vector<16xf32> to vector<16x1xf32>
    %cst_38 = arith.constant 3.200000e+01 : f32
    %115 = vector.broadcast %cst_38 : f32 to vector<16x1xf32>
    %116 = arith.divf %114, %115 : vector<16x1xf32>
    %117 = vector.broadcast %116 : vector<16x1xf32> to vector<16x32xf32>
    %118 = arith.subf %110, %117 : vector<16x32xf32>
    %119 = arith.mulf %118, %118 : vector<16x32xf32>
    %cst_39 = arith.constant dense<0.000000e+00> : vector<16xf32>
    %120 = vector.multi_reduction <add>, %119, %cst_39 [1] : vector<16x32xf32> to vector<16xf32>
    %121 = vector.shape_cast %120 : vector<16xf32> to vector<16x1xf32>
    %cst_40 = arith.constant 3.200000e+01 : f32
    %122 = vector.broadcast %cst_40 : f32 to vector<16x1xf32>
    %123 = arith.divf %121, %122 : vector<16x1xf32>
    %124 = vector.broadcast %116 : vector<16x1xf32> to vector<16x32xf32>
    %125 = arith.subf %110, %124 : vector<16x32xf32>
    %cst_41 = arith.constant 9.99999996E-13 : f32
    %126 = vector.broadcast %cst_41 : f32 to vector<16x1xf32>
    %127 = arith.addf %123, %126 : vector<16x1xf32>
    %128 = math.rsqrt %127 : vector<16x1xf32>
    %129 = vector.broadcast %128 : vector<16x1xf32> to vector<16x32xf32>
    %130 = arith.mulf %125, %129 : vector<16x32xf32>
    %131 = vector.broadcast %111 : vector<1x32xf32> to vector<16x32xf32>
    %132 = arith.mulf %130, %131 : vector<16x32xf32>
    %133 = vector.broadcast %112 : vector<1x32xf32> to vector<16x32xf32>
    %134 = arith.addf %132, %133 : vector<16x32xf32>
    %c0_42 = arith.constant 0 : index
    %c0_43 = arith.constant 0 : index
    %c0_44 = arith.constant 0 : index
    %135 = vector.load %arg5[%c0_42, %c0_43, %c0_44] : memref<2x32x64xf32, #tpu.memory_space<vmem>>, vector<1x32x64xf32>
    %136 = vector.shape_cast %135 : vector<1x32x64xf32> to vector<32x64xf32>
    %cst_45 = arith.constant dense<0.000000e+00> : vector<16x64xf32>
    %137 = tpu.matmul %134, %136, %cst_45 {dimension_numbers = #tpu.dot_dimension_numbers<[1], [0], [0], [1], [0, 0, 1, 1], [], []>} : vector<16x32xf32>, vector<32x64xf32>, vector<16x64xf32> -> vector<16x64xf32>
    %138 = vector.extract_strided_slice %30 {offsets = [4, 0], sizes = [1, 64], strides = [1, 1]} : vector<8x96xf32> to vector<1x64xf32>
    %139 = vector.broadcast %138 : vector<1x64xf32> to vector<16x64xf32>
    %140 = arith.addf %137, %139 : vector<16x64xf32>
    %141 = arith.mulf %140, %140 : vector<16x64xf32>
    %142 = arith.mulf %140, %141 : vector<16x64xf32>
    %cst_46 = arith.constant 4.471500e-02 : f32
    %143 = vector.broadcast %cst_46 : f32 to vector<16x64xf32>
    %144 = arith.mulf %143, %142 : vector<16x64xf32>
    %145 = arith.addf %140, %144 : vector<16x64xf32>
    %cst_47 = arith.constant 0.797884583 : f32
    %146 = vector.broadcast %cst_47 : f32 to vector<16x64xf32>
    %147 = arith.mulf %146, %145 : vector<16x64xf32>
    %148 = math.tanh %147 : vector<16x64xf32>
    %cst_48 = arith.constant 1.000000e+00 : f32
    %149 = vector.broadcast %cst_48 : f32 to vector<16x64xf32>
    %150 = arith.addf %149, %148 : vector<16x64xf32>
    %cst_49 = arith.constant 5.000000e-01 : f32
    %151 = vector.broadcast %cst_49 : f32 to vector<16x64xf32>
    %152 = arith.mulf %151, %150 : vector<16x64xf32>
    %153 = arith.mulf %140, %152 : vector<16x64xf32>
    %c0_50 = arith.constant 0 : index
    %c0_51 = arith.constant 0 : index
    %c0_52 = arith.constant 0 : index
    %154 = vector.load %arg6[%c0_50, %c0_51, %c0_52] : memref<2x64x32xf32, #tpu.memory_space<vmem>>, vector<1x64x32xf32>
    %155 = vector.shape_cast %154 : vector<1x64x32xf32> to vector<64x32xf32>
    %cst_53 = arith.constant dense<0.000000e+00> : vector<16x32xf32>
    %156 = tpu.matmul %153, %155, %cst_53 {dimension_numbers = #tpu.dot_dimension_numbers<[1], [0], [0], [1], [0, 0, 1, 1], [], []>} : vector<16x64xf32>, vector<64x32xf32>, vector<16x32xf32> -> vector<16x32xf32>
    %157 = vector.extract_strided_slice %30 {offsets = [5, 0], sizes = [1, 32], strides = [1, 1]} : vector<8x96xf32> to vector<1x32xf32>
    %158 = vector.broadcast %157 : vector<1x32xf32> to vector<16x32xf32>
    %159 = arith.addf %156, %158 : vector<16x32xf32>
    %160 = arith.addf %159, %134 : vector<16x32xf32>
    %161 = vector.extract_strided_slice %30 {offsets = [6, 0], sizes = [1, 32], strides = [1, 1]} : vector<8x96xf32> to vector<1x32xf32>
    %162 = vector.extract_strided_slice %30 {offsets = [7, 0], sizes = [1, 32], strides = [1, 1]} : vector<8x96xf32> to vector<1x32xf32>
    %cst_54 = arith.constant dense<0.000000e+00> : vector<16xf32>
    %163 = vector.multi_reduction <add>, %160, %cst_54 [1] : vector<16x32xf32> to vector<16xf32>
    %164 = vector.shape_cast %163 : vector<16xf32> to vector<16x1xf32>
    %cst_55 = arith.constant 3.200000e+01 : f32
    %165 = vector.broadcast %cst_55 : f32 to vector<16x1xf32>
    %166 = arith.divf %164, %165 : vector<16x1xf32>
    %167 = vector.broadcast %166 : vector<16x1xf32> to vector<16x32xf32>
    %168 = arith.subf %160, %167 : vector<16x32xf32>
    %169 = arith.mulf %168, %168 : vector<16x32xf32>
    %cst_56 = arith.constant dense<0.000000e+00> : vector<16xf32>
    %170 = vector.multi_reduction <add>, %169, %cst_56 [1] : vector<16x32xf32> to vector<16xf32>
    %171 = vector.shape_cast %170 : vector<16xf32> to vector<16x1xf32>
    %cst_57 = arith.constant 3.200000e+01 : f32
    %172 = vector.broadcast %cst_57 : f32 to vector<16x1xf32>
    %173 = arith.divf %171, %172 : vector<16x1xf32>
    %174 = vector.broadcast %166 : vector<16x1xf32> to vector<16x32xf32>
    %175 = arith.subf %160, %174 : vector<16x32xf32>
    %cst_58 = arith.constant 9.99999996E-13 : f32
    %176 = vector.broadcast %cst_58 : f32 to vector<16x1xf32>
    %177 = arith.addf %173, %176 : vector<16x1xf32>
    %178 = math.rsqrt %177 : vector<16x1xf32>
    %179 = vector.broadcast %178 : vector<16x1xf32> to vector<16x32xf32>
    %180 = arith.mulf %175, %179 : vector<16x32xf32>
    %181 = vector.broadcast %161 : vector<1x32xf32> to vector<16x32xf32>
    %182 = arith.mulf %180, %181 : vector<16x32xf32>
    %183 = vector.broadcast %162 : vector<1x32xf32> to vector<16x32xf32>
    %184 = arith.addf %182, %183 : vector<16x32xf32>
    %c1 = arith.constant 1 : index
    %c0_59 = arith.constant 0 : index
    %c0_60 = arith.constant 0 : index
    %185 = vector.load %arg7[%c1, %c0_59, %c0_60] : memref<2x8x96xf32, #tpu.memory_space<vmem>>, vector<1x8x96xf32>
    %186 = vector.shape_cast %185 : vector<1x8x96xf32> to vector<8x96xf32>
    %c1_61 = arith.constant 1 : index
    %c0_62 = arith.constant 0 : index
    %c0_63 = arith.constant 0 : index
    %187 = vector.load %arg3[%c1_61, %c0_62, %c0_63] : memref<2x32x96xf32, #tpu.memory_space<vmem>>, vector<1x32x96xf32>
    %188 = vector.shape_cast %187 : vector<1x32x96xf32> to vector<32x96xf32>
    %cst_64 = arith.constant dense<0.000000e+00> : vector<16x96xf32>
    %189 = tpu.matmul %184, %188, %cst_64 {dimension_numbers = #tpu.dot_dimension_numbers<[1], [0], [0], [1], [0, 0, 1, 1], [], []>} : vector<16x32xf32>, vector<32x96xf32>, vector<16x96xf32> -> vector<16x96xf32>
    %190 = vector.extract_strided_slice %186 {offsets = [0, 0], sizes = [1, 96], strides = [1, 1]} : vector<8x96xf32> to vector<1x96xf32>
    %191 = vector.broadcast %190 : vector<1x96xf32> to vector<16x96xf32>
    %192 = arith.addf %189, %191 : vector<16x96xf32>
    %193 = vector.shape_cast %192 : vector<16x96xf32> to vector<2x8x96xf32>
    %194 = vector.extract_strided_slice %193 {offsets = [0, 0, 0], sizes = [2, 8, 8], strides = [1, 1, 1]} : vector<2x8x96xf32> to vector<2x8x8xf32>
    %195 = vector.extract_strided_slice %193 {offsets = [0, 0, 32], sizes = [2, 8, 8], strides = [1, 1, 1]} : vector<2x8x96xf32> to vector<2x8x8xf32>
    %196 = vector.extract_strided_slice %193 {offsets = [0, 0, 64], sizes = [2, 8, 8], strides = [1, 1, 1]} : vector<2x8x96xf32> to vector<2x8x8xf32>
    "tpu.trace_start"() <{level = 10 : i32, message = "bqd,bkd->bqk"}> : () -> ()
    %cst_65 = arith.constant dense<0.000000e+00> : vector<2x8x8xf32>
    %197 = tpu.matmul %194, %195, %cst_65 {dimension_numbers = #tpu.dot_dimension_numbers<[2], [2], [1], [1], [0, 0, 0, 1, 1, 1], [0], [0]>} : vector<2x8x8xf32>, vector<2x8x8xf32>, vector<2x8x8xf32> -> vector<2x8x8xf32>
    "tpu.trace_stop"() : () -> ()
    %198 = arith.addf %197, %28 : vector<2x8x8xf32>
    %cst_66 = arith.constant dense<0xFF800000> : vector<2x8xf32>
    %199 = vector.multi_reduction <maximumf>, %198, %cst_66 [2] : vector<2x8x8xf32> to vector<2x8xf32>
    %200 = vector.shape_cast %199 : vector<2x8xf32> to vector<2x8x1xf32>
    %201 = vector.broadcast %200 : vector<2x8x1xf32> to vector<2x8x8xf32>
    %202 = arith.subf %198, %201 : vector<2x8x8xf32>
    %203 = math.exp %202 : vector<2x8x8xf32>
    %cst_67 = arith.constant dense<0.000000e+00> : vector<2x8xf32>
    %204 = vector.multi_reduction <add>, %203, %cst_67 [2] : vector<2x8x8xf32> to vector<2x8xf32>
    %205 = vector.shape_cast %204 : vector<2x8xf32> to vector<2x8x1xf32>
    %206 = tpu.reciprocal %205 {approx = true} : vector<2x8x1xf32> -> vector<2x8x1xf32>
    %207 = vector.broadcast %206 : vector<2x8x1xf32> to vector<2x8x8xf32>
    %208 = arith.mulf %203, %207 : vector<2x8x8xf32>
    "tpu.trace_start"() <{level = 10 : i32, message = "bqk,bkd->bqd"}> : () -> ()
    %cst_68 = arith.constant dense<0.000000e+00> : vector<2x8x8xf32>
    %209 = tpu.matmul %208, %196, %cst_68 {dimension_numbers = #tpu.dot_dimension_numbers<[2], [1], [1], [2], [0, 0, 0, 1, 1, 2], [0], [0]>} : vector<2x8x8xf32>, vector<2x8x8xf32>, vector<2x8x8xf32> -> vector<2x8x8xf32>
    "tpu.trace_stop"() : () -> ()
    %210 = vector.extract_strided_slice %193 {offsets = [0, 0, 8], sizes = [2, 8, 8], strides = [1, 1, 1]} : vector<2x8x96xf32> to vector<2x8x8xf32>
    %211 = vector.extract_strided_slice %193 {offsets = [0, 0, 40], sizes = [2, 8, 8], strides = [1, 1, 1]} : vector<2x8x96xf32> to vector<2x8x8xf32>
    %212 = vector.extract_strided_slice %193 {offsets = [0, 0, 72], sizes = [2, 8, 8], strides = [1, 1, 1]} : vector<2x8x96xf32> to vector<2x8x8xf32>
    "tpu.trace_start"() <{level = 10 : i32, message = "bqd,bkd->bqk"}> : () -> ()
    %cst_69 = arith.constant dense<0.000000e+00> : vector<2x8x8xf32>
    %213 = tpu.matmul %210, %211, %cst_69 {dimension_numbers = #tpu.dot_dimension_numbers<[2], [2], [1], [1], [0, 0, 0, 1, 1, 1], [0], [0]>} : vector<2x8x8xf32>, vector<2x8x8xf32>, vector<2x8x8xf32> -> vector<2x8x8xf32>
    "tpu.trace_stop"() : () -> ()
    %214 = arith.addf %213, %28 : vector<2x8x8xf32>
    %cst_70 = arith.constant dense<0xFF800000> : vector<2x8xf32>
    %215 = vector.multi_reduction <maximumf>, %214, %cst_70 [2] : vector<2x8x8xf32> to vector<2x8xf32>
    %216 = vector.shape_cast %215 : vector<2x8xf32> to vector<2x8x1xf32>
    %217 = vector.broadcast %216 : vector<2x8x1xf32> to vector<2x8x8xf32>
    %218 = arith.subf %214, %217 : vector<2x8x8xf32>
    %219 = math.exp %218 : vector<2x8x8xf32>
    %cst_71 = arith.constant dense<0.000000e+00> : vector<2x8xf32>
    %220 = vector.multi_reduction <add>, %219, %cst_71 [2] : vector<2x8x8xf32> to vector<2x8xf32>
    %221 = vector.shape_cast %220 : vector<2x8xf32> to vector<2x8x1xf32>
    %222 = tpu.reciprocal %221 {approx = true} : vector<2x8x1xf32> -> vector<2x8x1xf32>
    %223 = vector.broadcast %222 : vector<2x8x1xf32> to vector<2x8x8xf32>
    %224 = arith.mulf %219, %223 : vector<2x8x8xf32>
    "tpu.trace_start"() <{level = 10 : i32, message = "bqk,bkd->bqd"}> : () -> ()
    %cst_72 = arith.constant dense<0.000000e+00> : vector<2x8x8xf32>
    %225 = tpu.matmul %224, %212, %cst_72 {dimension_numbers = #tpu.dot_dimension_numbers<[2], [1], [1], [2], [0, 0, 0, 1, 1, 2], [0], [0]>} : vector<2x8x8xf32>, vector<2x8x8xf32>, vector<2x8x8xf32> -> vector<2x8x8xf32>
    "tpu.trace_stop"() : () -> ()
    %226 = vector.extract_strided_slice %193 {offsets = [0, 0, 16], sizes = [2, 8, 8], strides = [1, 1, 1]} : vector<2x8x96xf32> to vector<2x8x8xf32>
    %227 = vector.extract_strided_slice %193 {offsets = [0, 0, 48], sizes = [2, 8, 8], strides = [1, 1, 1]} : vector<2x8x96xf32> to vector<2x8x8xf32>
    %228 = vector.extract_strided_slice %193 {offsets = [0, 0, 80], sizes = [2, 8, 8], strides = [1, 1, 1]} : vector<2x8x96xf32> to vector<2x8x8xf32>
    "tpu.trace_start"() <{level = 10 : i32, message = "bqd,bkd->bqk"}> : () -> ()
    %cst_73 = arith.constant dense<0.000000e+00> : vector<2x8x8xf32>
    %229 = tpu.matmul %226, %227, %cst_73 {dimension_numbers = #tpu.dot_dimension_numbers<[2], [2], [1], [1], [0, 0, 0, 1, 1, 1], [0], [0]>} : vector<2x8x8xf32>, vector<2x8x8xf32>, vector<2x8x8xf32> -> vector<2x8x8xf32>
    "tpu.trace_stop"() : () -> ()
    %230 = arith.addf %229, %28 : vector<2x8x8xf32>
    %cst_74 = arith.constant dense<0xFF800000> : vector<2x8xf32>
    %231 = vector.multi_reduction <maximumf>, %230, %cst_74 [2] : vector<2x8x8xf32> to vector<2x8xf32>
    %232 = vector.shape_cast %231 : vector<2x8xf32> to vector<2x8x1xf32>
    %233 = vector.broadcast %232 : vector<2x8x1xf32> to vector<2x8x8xf32>
    %234 = arith.subf %230, %233 : vector<2x8x8xf32>
    %235 = math.exp %234 : vector<2x8x8xf32>
    %cst_75 = arith.constant dense<0.000000e+00> : vector<2x8xf32>
    %236 = vector.multi_reduction <add>, %235, %cst_75 [2] : vector<2x8x8xf32> to vector<2x8xf32>
    %237 = vector.shape_cast %236 : vector<2x8xf32> to vector<2x8x1xf32>
    %238 = tpu.reciprocal %237 {approx = true} : vector<2x8x1xf32> -> vector<2x8x1xf32>
    %239 = vector.broadcast %238 : vector<2x8x1xf32> to vector<2x8x8xf32>
    %240 = arith.mulf %235, %239 : vector<2x8x8xf32>
    "tpu.trace_start"() <{level = 10 : i32, message = "bqk,bkd->bqd"}> : () -> ()
    %cst_76 = arith.constant dense<0.000000e+00> : vector<2x8x8xf32>
    %241 = tpu.matmul %240, %228, %cst_76 {dimension_numbers = #tpu.dot_dimension_numbers<[2], [1], [1], [2], [0, 0, 0, 1, 1, 2], [0], [0]>} : vector<2x8x8xf32>, vector<2x8x8xf32>, vector<2x8x8xf32> -> vector<2x8x8xf32>
    "tpu.trace_stop"() : () -> ()
    %242 = vector.extract_strided_slice %193 {offsets = [0, 0, 24], sizes = [2, 8, 8], strides = [1, 1, 1]} : vector<2x8x96xf32> to vector<2x8x8xf32>
    %243 = vector.extract_strided_slice %193 {offsets = [0, 0, 56], sizes = [2, 8, 8], strides = [1, 1, 1]} : vector<2x8x96xf32> to vector<2x8x8xf32>
    %244 = vector.extract_strided_slice %193 {offsets = [0, 0, 88], sizes = [2, 8, 8], strides = [1, 1, 1]} : vector<2x8x96xf32> to vector<2x8x8xf32>
    "tpu.trace_start"() <{level = 10 : i32, message = "bqd,bkd->bqk"}> : () -> ()
    %cst_77 = arith.constant dense<0.000000e+00> : vector<2x8x8xf32>
    %245 = tpu.matmul %242, %243, %cst_77 {dimension_numbers = #tpu.dot_dimension_numbers<[2], [2], [1], [1], [0, 0, 0, 1, 1, 1], [0], [0]>} : vector<2x8x8xf32>, vector<2x8x8xf32>, vector<2x8x8xf32> -> vector<2x8x8xf32>
    "tpu.trace_stop"() : () -> ()
    %246 = arith.addf %245, %28 : vector<2x8x8xf32>
    %cst_78 = arith.constant dense<0xFF800000> : vector<2x8xf32>
    %247 = vector.multi_reduction <maximumf>, %246, %cst_78 [2] : vector<2x8x8xf32> to vector<2x8xf32>
    %248 = vector.shape_cast %247 : vector<2x8xf32> to vector<2x8x1xf32>
    %249 = vector.broadcast %248 : vector<2x8x1xf32> to vector<2x8x8xf32>
    %250 = arith.subf %246, %249 : vector<2x8x8xf32>
    %251 = math.exp %250 : vector<2x8x8xf32>
    %cst_79 = arith.constant dense<0.000000e+00> : vector<2x8xf32>
    %252 = vector.multi_reduction <add>, %251, %cst_79 [2] : vector<2x8x8xf32> to vector<2x8xf32>
    %253 = vector.shape_cast %252 : vector<2x8xf32> to vector<2x8x1xf32>
    %254 = tpu.reciprocal %253 {approx = true} : vector<2x8x1xf32> -> vector<2x8x1xf32>
    %255 = vector.broadcast %254 : vector<2x8x1xf32> to vector<2x8x8xf32>
    %256 = arith.mulf %251, %255 : vector<2x8x8xf32>
    "tpu.trace_start"() <{level = 10 : i32, message = "bqk,bkd->bqd"}> : () -> ()
    %cst_80 = arith.constant dense<0.000000e+00> : vector<2x8x8xf32>
    %257 = tpu.matmul %256, %244, %cst_80 {dimension_numbers = #tpu.dot_dimension_numbers<[2], [1], [1], [2], [0, 0, 0, 1, 1, 2], [0], [0]>} : vector<2x8x8xf32>, vector<2x8x8xf32>, vector<2x8x8xf32> -> vector<2x8x8xf32>
    "tpu.trace_stop"() : () -> ()
    %258 = tpu.concatenate %209, %225, %241, %257 in 2 : vector<2x8x8xf32>, vector<2x8x8xf32>, vector<2x8x8xf32>, vector<2x8x8xf32> -> vector<2x8x32xf32>
    %259 = vector.shape_cast %258 : vector<2x8x32xf32> to vector<16x32xf32>
    %c1_81 = arith.constant 1 : index
    %c0_82 = arith.constant 0 : index
    %c0_83 = arith.constant 0 : index
    %260 = vector.load %arg4[%c1_81, %c0_82, %c0_83] : memref<2x32x32xf32, #tpu.memory_space<vmem>>, vector<1x32x32xf32>
    %261 = vector.shape_cast %260 : vector<1x32x32xf32> to vector<32x32xf32>
    %cst_84 = arith.constant dense<0.000000e+00> : vector<16x32xf32>
    %262 = tpu.matmul %259, %261, %cst_84 {dimension_numbers = #tpu.dot_dimension_numbers<[1], [0], [0], [1], [0, 0, 1, 1], [], []>} : vector<16x32xf32>, vector<32x32xf32>, vector<16x32xf32> -> vector<16x32xf32>
    %263 = vector.extract_strided_slice %186 {offsets = [1, 0], sizes = [1, 32], strides = [1, 1]} : vector<8x96xf32> to vector<1x32xf32>
    %264 = vector.broadcast %263 : vector<1x32xf32> to vector<16x32xf32>
    %265 = arith.addf %262, %264 : vector<16x32xf32>
    %266 = arith.addf %265, %184 : vector<16x32xf32>
    %267 = vector.extract_strided_slice %186 {offsets = [2, 0], sizes = [1, 32], strides = [1, 1]} : vector<8x96xf32> to vector<1x32xf32>
    %268 = vector.extract_strided_slice %186 {offsets = [3, 0], sizes = [1, 32], strides = [1, 1]} : vector<8x96xf32> to vector<1x32xf32>
    %cst_85 = arith.constant dense<0.000000e+00> : vector<16xf32>
    %269 = vector.multi_reduction <add>, %266, %cst_85 [1] : vector<16x32xf32> to vector<16xf32>
    %270 = vector.shape_cast %269 : vector<16xf32> to vector<16x1xf32>
    %cst_86 = arith.constant 3.200000e+01 : f32
    %271 = vector.broadcast %cst_86 : f32 to vector<16x1xf32>
    %272 = arith.divf %270, %271 : vector<16x1xf32>
    %273 = vector.broadcast %272 : vector<16x1xf32> to vector<16x32xf32>
    %274 = arith.subf %266, %273 : vector<16x32xf32>
    %275 = arith.mulf %274, %274 : vector<16x32xf32>
    %cst_87 = arith.constant dense<0.000000e+00> : vector<16xf32>
    %276 = vector.multi_reduction <add>, %275, %cst_87 [1] : vector<16x32xf32> to vector<16xf32>
    %277 = vector.shape_cast %276 : vector<16xf32> to vector<16x1xf32>
    %cst_88 = arith.constant 3.200000e+01 : f32
    %278 = vector.broadcast %cst_88 : f32 to vector<16x1xf32>
    %279 = arith.divf %277, %278 : vector<16x1xf32>
    %280 = vector.broadcast %272 : vector<16x1xf32> to vector<16x32xf32>
    %281 = arith.subf %266, %280 : vector<16x32xf32>
    %cst_89 = arith.constant 9.99999996E-13 : f32
    %282 = vector.broadcast %cst_89 : f32 to vector<16x1xf32>
    %283 = arith.addf %279, %282 : vector<16x1xf32>
    %284 = math.rsqrt %283 : vector<16x1xf32>
    %285 = vector.broadcast %284 : vector<16x1xf32> to vector<16x32xf32>
    %286 = arith.mulf %281, %285 : vector<16x32xf32>
    %287 = vector.broadcast %267 : vector<1x32xf32> to vector<16x32xf32>
    %288 = arith.mulf %286, %287 : vector<16x32xf32>
    %289 = vector.broadcast %268 : vector<1x32xf32> to vector<16x32xf32>
    %290 = arith.addf %288, %289 : vector<16x32xf32>
    %c1_90 = arith.constant 1 : index
    %c0_91 = arith.constant 0 : index
    %c0_92 = arith.constant 0 : index
    %291 = vector.load %arg5[%c1_90, %c0_91, %c0_92] : memref<2x32x64xf32, #tpu.memory_space<vmem>>, vector<1x32x64xf32>
    %292 = vector.shape_cast %291 : vector<1x32x64xf32> to vector<32x64xf32>
    %cst_93 = arith.constant dense<0.000000e+00> : vector<16x64xf32>
    %293 = tpu.matmul %290, %292, %cst_93 {dimension_numbers = #tpu.dot_dimension_numbers<[1], [0], [0], [1], [0, 0, 1, 1], [], []>} : vector<16x32xf32>, vector<32x64xf32>, vector<16x64xf32> -> vector<16x64xf32>
    %294 = vector.extract_strided_slice %186 {offsets = [4, 0], sizes = [1, 64], strides = [1, 1]} : vector<8x96xf32> to vector<1x64xf32>
    %295 = vector.broadcast %294 : vector<1x64xf32> to vector<16x64xf32>
    %296 = arith.addf %293, %295 : vector<16x64xf32>
    %297 = arith.mulf %296, %296 : vector<16x64xf32>
    %298 = arith.mulf %296, %297 : vector<16x64xf32>
    %cst_94 = arith.constant 4.471500e-02 : f32
    %299 = vector.broadcast %cst_94 : f32 to vector<16x64xf32>
    %300 = arith.mulf %299, %298 : vector<16x64xf32>
    %301 = arith.addf %296, %300 : vector<16x64xf32>
    %cst_95 = arith.constant 0.797884583 : f32
    %302 = vector.broadcast %cst_95 : f32 to vector<16x64xf32>
    %303 = arith.mulf %302, %301 : vector<16x64xf32>
    %304 = math.tanh %303 : vector<16x64xf32>
    %cst_96 = arith.constant 1.000000e+00 : f32
    %305 = vector.broadcast %cst_96 : f32 to vector<16x64xf32>
    %306 = arith.addf %305, %304 : vector<16x64xf32>
    %cst_97 = arith.constant 5.000000e-01 : f32
    %307 = vector.broadcast %cst_97 : f32 to vector<16x64xf32>
    %308 = arith.mulf %307, %306 : vector<16x64xf32>
    %309 = arith.mulf %296, %308 : vector<16x64xf32>
    %c1_98 = arith.constant 1 : index
    %c0_99 = arith.constant 0 : index
    %c0_100 = arith.constant 0 : index
    %310 = vector.load %arg6[%c1_98, %c0_99, %c0_100] : memref<2x64x32xf32, #tpu.memory_space<vmem>>, vector<1x64x32xf32>
    %311 = vector.shape_cast %310 : vector<1x64x32xf32> to vector<64x32xf32>
    %cst_101 = arith.constant dense<0.000000e+00> : vector<16x32xf32>
    %312 = tpu.matmul %309, %311, %cst_101 {dimension_numbers = #tpu.dot_dimension_numbers<[1], [0], [0], [1], [0, 0, 1, 1], [], []>} : vector<16x64xf32>, vector<64x32xf32>, vector<16x32xf32> -> vector<16x32xf32>
    %313 = vector.extract_strided_slice %186 {offsets = [5, 0], sizes = [1, 32], strides = [1, 1]} : vector<8x96xf32> to vector<1x32xf32>
    %314 = vector.broadcast %313 : vector<1x32xf32> to vector<16x32xf32>
    %315 = arith.addf %312, %314 : vector<16x32xf32>
    %316 = arith.addf %315, %290 : vector<16x32xf32>
    %317 = vector.extract_strided_slice %186 {offsets = [6, 0], sizes = [1, 32], strides = [1, 1]} : vector<8x96xf32> to vector<1x32xf32>
    %318 = vector.extract_strided_slice %186 {offsets = [7, 0], sizes = [1, 32], strides = [1, 1]} : vector<8x96xf32> to vector<1x32xf32>
    %cst_102 = arith.constant dense<0.000000e+00> : vector<16xf32>
    %319 = vector.multi_reduction <add>, %316, %cst_102 [1] : vector<16x32xf32> to vector<16xf32>
    %320 = vector.shape_cast %319 : vector<16xf32> to vector<16x1xf32>
    %cst_103 = arith.constant 3.200000e+01 : f32
    %321 = vector.broadcast %cst_103 : f32 to vector<16x1xf32>
    %322 = arith.divf %320, %321 : vector<16x1xf32>
    %323 = vector.broadcast %322 : vector<16x1xf32> to vector<16x32xf32>
    %324 = arith.subf %316, %323 : vector<16x32xf32>
    %325 = arith.mulf %324, %324 : vector<16x32xf32>
    %cst_104 = arith.constant dense<0.000000e+00> : vector<16xf32>
    %326 = vector.multi_reduction <add>, %325, %cst_104 [1] : vector<16x32xf32> to vector<16xf32>
    %327 = vector.shape_cast %326 : vector<16xf32> to vector<16x1xf32>
    %cst_105 = arith.constant 3.200000e+01 : f32
    %328 = vector.broadcast %cst_105 : f32 to vector<16x1xf32>
    %329 = arith.divf %327, %328 : vector<16x1xf32>
    %330 = vector.broadcast %322 : vector<16x1xf32> to vector<16x32xf32>
    %331 = arith.subf %316, %330 : vector<16x32xf32>
    %cst_106 = arith.constant 9.99999996E-13 : f32
    %332 = vector.broadcast %cst_106 : f32 to vector<16x1xf32>
    %333 = arith.addf %329, %332 : vector<16x1xf32>
    %334 = math.rsqrt %333 : vector<16x1xf32>
    %335 = vector.broadcast %334 : vector<16x1xf32> to vector<16x32xf32>
    %336 = arith.mulf %331, %335 : vector<16x32xf32>
    %337 = vector.broadcast %317 : vector<1x32xf32> to vector<16x32xf32>
    %338 = arith.mulf %336, %337 : vector<16x32xf32>
    %339 = vector.broadcast %318 : vector<1x32xf32> to vector<16x32xf32>
    %340 = arith.addf %338, %339 : vector<16x32xf32>
    %341 = vector.shape_cast %340 : vector<16x32xf32> to vector<2x8x32xf32>
    %342 = vector.extract_strided_slice %341 {offsets = [0, 0, 0], sizes = [2, 1, 32], strides = [1, 1, 1]} : vector<2x8x32xf32> to vector<2x1x32xf32>
    %343 = vector.shape_cast %342 : vector<2x1x32xf32> to vector<2x32xf32>
    %c0_107 = arith.constant 0 : index
    %c0_108 = arith.constant 0 : index
    %c0_109 = arith.constant 0 : index
    %344 = vector.load %arg8[%c0_107, %c0_108, %c0_109] : memref<3x32x32xf32, #tpu.memory_space<vmem>>, vector<1x32x32xf32>
    %345 = vector.shape_cast %344 : vector<1x32x32xf32> to vector<32x32xf32>
    %cst_110 = arith.constant dense<0.000000e+00> : vector<2x32xf32>
    %346 = tpu.matmul %343, %345, %cst_110 {dimension_numbers = #tpu.dot_dimension_numbers<[1], [0], [0], [1], [0, 0, 1, 1], [], []>} : vector<2x32xf32>, vector<32x32xf32>, vector<2x32xf32> -> vector<2x32xf32>
    %347 = vector.extract_strided_slice %0 {offsets = [2, 0], sizes = [1, 32], strides = [1, 1]} : vector<8x32xf32> to vector<1x32xf32>
    %348 = vector.broadcast %347 : vector<1x32xf32> to vector<2x32xf32>
    %349 = arith.addf %346, %348 : vector<2x32xf32>
    %350 = math.tanh %349 : vector<2x32xf32>
    %c1_111 = arith.constant 1 : index
    %c0_112 = arith.constant 0 : index
    %c0_113 = arith.constant 0 : index
    %351 = vector.load %arg8[%c1_111, %c0_112, %c0_113] : memref<3x32x32xf32, #tpu.memory_space<vmem>>, vector<1x32x32xf32>
    %352 = vector.shape_cast %351 : vector<1x32x32xf32> to vector<32x32xf32>
    %cst_114 = arith.constant dense<0.000000e+00> : vector<2x32xf32>
    %353 = tpu.matmul %350, %352, %cst_114 {dimension_numbers = #tpu.dot_dimension_numbers<[1], [0], [0], [1], [0, 0, 1, 1], [], []>} : vector<2x32xf32>, vector<32x32xf32>, vector<2x32xf32> -> vector<2x32xf32>
    %354 = vector.extract_strided_slice %0 {offsets = [3, 0], sizes = [1, 32], strides = [1, 1]} : vector<8x32xf32> to vector<1x32xf32>
    %355 = vector.broadcast %354 : vector<1x32xf32> to vector<2x32xf32>
    %356 = arith.addf %353, %355 : vector<2x32xf32>
    %357 = math.tanh %356 : vector<2x32xf32>
    %c2 = arith.constant 2 : index
    %c0_115 = arith.constant 0 : index
    %c0_116 = arith.constant 0 : index
    %358 = vector.load %arg8[%c2, %c0_115, %c0_116] : memref<3x32x32xf32, #tpu.memory_space<vmem>>, vector<1x32x32xf32>
    %359 = vector.shape_cast %358 : vector<1x32x32xf32> to vector<32x32xf32>
    %cst_117 = arith.constant dense<0.000000e+00> : vector<2x32xf32>
    %360 = tpu.matmul %357, %359, %cst_117 {dimension_numbers = #tpu.dot_dimension_numbers<[1], [0], [0], [1], [0, 0, 1, 1], [], []>} : vector<2x32xf32>, vector<32x32xf32>, vector<2x32xf32> -> vector<2x32xf32>
    %361 = vector.extract_strided_slice %0 {offsets = [4, 0], sizes = [1, 32], strides = [1, 1]} : vector<8x32xf32> to vector<1x32xf32>
    %362 = vector.broadcast %361 : vector<1x32xf32> to vector<2x32xf32>
    %363 = arith.addf %360, %362 : vector<2x32xf32>
    %c0_118 = arith.constant 0 : index
    %c0_119 = arith.constant 0 : index
    %c0_120 = arith.constant 0 : index
    %364 = vector.load %arg9[%c0_118, %c0_119, %c0_120] : memref<3x2x32xf32, #tpu.memory_space<vmem>>, vector<1x2x32xf32>
    %365 = vector.shape_cast %364 : vector<1x2x32xf32> to vector<2x32xf32>
    %366 = vector.shape_cast %343 : vector<2x32xf32> to vector<1x2x32xf32>
    tpu.vector_store %arg9[%c0_118, %c0_119, %c0_120], %366 {strides = array<i32>} : memref<3x2x32xf32, #tpu.memory_space<vmem>>, vector<1x2x32xf32>,
    %c1_121 = arith.constant 1 : index
    %c0_122 = arith.constant 0 : index
    %c0_123 = arith.constant 0 : index
    %367 = vector.load %arg9[%c1_121, %c0_122, %c0_123] : memref<3x2x32xf32, #tpu.memory_space<vmem>>, vector<1x2x32xf32>
    %368 = vector.shape_cast %367 : vector<1x2x32xf32> to vector<2x32xf32>
    %369 = vector.shape_cast %357 : vector<2x32xf32> to vector<1x2x32xf32>
    tpu.vector_store %arg9[%c1_121, %c0_122, %c0_123], %369 {strides = array<i32>} : memref<3x2x32xf32, #tpu.memory_space<vmem>>, vector<1x2x32xf32>,
    %c2_124 = arith.constant 2 : index
    %c0_125 = arith.constant 0 : index
    %c0_126 = arith.constant 0 : index
    %370 = vector.load %arg9[%c2_124, %c0_125, %c0_126] : memref<3x2x32xf32, #tpu.memory_space<vmem>>, vector<1x2x32xf32>
    %371 = vector.shape_cast %370 : vector<1x2x32xf32> to vector<2x32xf32>
    %372 = vector.shape_cast %363 : vector<2x32xf32> to vector<1x2x32xf32>
    tpu.vector_store %arg9[%c2_124, %c0_125, %c0_126], %372 {strides = array<i32>} : memref<3x2x32xf32, #tpu.memory_space<vmem>>, vector<1x2x32xf32>,
    return
  }
}

</mosaic_0001>

<llo_original>
// kernel: text_forward.1
$region0: #{text_forward.1}
  #allocation0 [shape = 'u32[]', space=smem, size = 0x4, offset = 0x4, fixed_abs, tag = 'smem constant byte address 0x4 - core index']
  #allocation1 [shape = 'u32[72,128]{1,0:T(1,128)}', space=vmem, size = 0x9000, scoped, tag = 'internal scratch']
  %s0 = inlined_call_operand.vmem [shape: f32[16,32], index: 0, kind: input, shape index: {}]
  %s1 = inlined_call_operand.vmem [shape: f32[2,1,8], index: 1, kind: input, shape index: {}]
  %s2 = inlined_call_operand.vmem [shape: f32[8,32], index: 2, kind: input, shape index: {}]
  %s3 = inlined_call_operand.hbm [shape: f32[2,32,96], index: 3, kind: input, shape index: {}]
  %s4 = inlined_call_operand.hbm [shape: f32[2,32,32], index: 4, kind: input, shape index: {}]
  %s5 = inlined_call_operand.hbm [shape: f32[2,32,64], index: 5, kind: input, shape index: {}]
  %s6 = inlined_call_operand.vmem [shape: f32[2,64,32], index: 6, kind: input, shape index: {}]
  %s7 = inlined_call_operand.vmem [shape: f32[2,8,96], index: 7, kind: input, shape index: {}]
  %s8 = inlined_call_operand.vmem [shape: f32[3,32,32], index: 8, kind: input, shape index: {}]
  %s9 = inlined_call_operand.vmem [shape: f32[3,2,32], index: 9, kind: output, shape index: {}]
  %s10 = sld [smem:[#allocation0]]
  $region58: #{text_forward.1} parent=0
    _
  %s12 = ssub.s32 1, %s10
  %s13 = scalar_select 0, %s12, %s10
  $region1: #{text_forward.1} parent=0
    #allocation2 [shape = 'u8[32768]{0}', space=vmem, size = 0x8000, scoped, tag = 'input window, operand 3, single buffered']
    #allocation3 [shape = 's32[1]{0}', space=sflag, size = 0x4, scoped, tag = 'scoped memory for text_forward.1']
    #allocation4 [shape = 'u8[32768]{0}', space=vmem, size = 0x8000, scoped, tag = 'input window, operand 4, single buffered']
    #allocation5 [shape = 's32[1]{0}', space=sflag, size = 0x4, scoped, tag = 'scoped memory for text_forward.1']
    #allocation6 [shape = 'u8[32768]{0}', space=vmem, size = 0x8000, scoped, tag = 'input window, operand 5, single buffered']
    %14 = vsyncpa [#allocation3], 0
    %15 = vsyncpa [#allocation5], 0
    // Predicated region
    $region2: #{text_forward.1} parent=1 // pred_check
      _
    $region3: #{text_forward.1} parent=1 // pred_check_branch
      %17 = sbr.rel (0) target = $region5
    $region4: #{text_forward.1} parent=1 // pred_region
      _
    $region5: #{text_forward.1} parent=1 // pred_fallthru
      _
    // Predicated region
    $region6: #{text_forward.1} parent=1 // pred_check
      _
    $region7: #{text_forward.1} parent=1 // pred_check_branch
      %19 = sbr.rel (0) target = $region9
    $region8: #{text_forward.1} parent=1 // pred_region
      _
    $region9: #{text_forward.1} parent=1 // pred_fallthru
      _
    // Predicated region
    $region10: #{text_forward.1} parent=1 // pred_check
      _
    $region11: #{text_forward.1} parent=1 // pred_check_branch
      %21 = sbr.rel (0) target = $region13
    $region12: #{text_forward.1} parent=1 // pred_region
      _
    $region13: #{text_forward.1} parent=1 // pred_fallthru
      _
    // Predicated region
    $region14: #{text_forward.1} parent=1 // pred_check
      _
    $region15: #{text_forward.1} parent=1 // pred_check_branch
      %23 = sbr.rel (0) target = $region17
    $region16: #{text_forward.1} parent=1 // pred_region
      %25 = vsyncadd [#allocation3], 0
      %s26 = sshll.u32 %s3, 4
      %s27 = int_to_ptr.hbm [resolvable:$true] %s26
      %s28 = sshll.u32 [#allocation2], 4
      %s29 = int_to_ptr.vmem [resolvable:$true] %s28
      %34 = dma.hbm_to_vmem [thread:$0]  %s27, 1024, %s29, [#allocation3], 128, 128, 8
    $region17: #{text_forward.1} parent=1 // pred_fallthru
      _
    // Predicated region
    $region18: #{text_forward.1} parent=1 // pred_check
      _
    $region19: #{text_forward.1} parent=1 // pred_check_branch
      %36 = sbr.rel (0) target = $region21
    $region20: #{text_forward.1} parent=1 // pred_region
      %38 = vsyncadd [#allocation5], 0
      %s39 = sshll.u32 %s4, 4
      %s40 = int_to_ptr.hbm [resolvable:$true] %s39
      %s41 = sshll.u32 [#allocation4], 4
      %s42 = int_to_ptr.vmem [resolvable:$true] %s41
      %47 = dma.hbm_to_vmem [thread:$0]  %s40, 1024, %s42, [#allocation5], 128, 128, 8
    $region21: #{text_forward.1} parent=1 // pred_fallthru
      _
    // Predicated region
    $region22: #{text_forward.1} parent=1 // pred_check
      _
    $region23: #{text_forward.1} parent=1 // pred_check_branch
      %49 = sbr.rel (0) target = $region25
    $region24: #{text_forward.1} parent=1 // pred_region
      %51 = vsyncadd [#allocation5], 0
      %s52 = sshll.u32 %s5, 4
      %s53 = int_to_ptr.hbm [resolvable:$true] %s52
      %s54 = sshll.u32 [#allocation6], 4
      %s55 = int_to_ptr.vmem [resolvable:$true] %s54
      %60 = dma.hbm_to_vmem [thread:$0]  %s53, 1024, %s55, [#allocation5], 128, 128, 8
    $region25: #{text_forward.1} parent=1 // pred_fallthru
      _
    // Predicated region
    $region26: #{text_forward.1} parent=1 // pred_check
      _
    $region27: #{text_forward.1} parent=1 // pred_check_branch
      %62 = sbr.rel (0) target = $region29
    $region28: #{text_forward.1} parent=1 // pred_region
      _
    $region29: #{text_forward.1} parent=1 // pred_fallthru
      _
    // Predicated region
    $region30: #{text_forward.1} parent=1 // pred_check
      _
    $region31: #{text_forward.1} parent=1 // pred_check_branch
      %64 = sbr.rel (0) target = $region33
    $region32: #{text_forward.1} parent=1 // pred_region
      _
    $region33: #{text_forward.1} parent=1 // pred_fallthru
      _
    // Predicated region
    $region34: #{text_forward.1} parent=1 // pred_check
      _
    $region35: #{text_forward.1} parent=1 // pred_check_branch
      %66 = sbr.rel (0) target = $region37
    $region36: #{text_forward.1} parent=1 // pred_region
      _
    $region37: #{text_forward.1} parent=1 // pred_fallthru
      _
    // Predicated region
    $region38: #{text_forward.1} parent=1 // pred_check
      _
    $region39: #{text_forward.1} parent=1 // pred_check_branch
      %68 = sbr.rel (0) target = $region41
    $region40: #{text_forward.1} parent=1 // pred_region
      %70 = dma.done [#allocation3], 1024
    $region41: #{text_forward.1} parent=1 // pred_fallthru
      _
    // Predicated region
    $region42: #{text_forward.1} parent=1 // pred_check
      _
    $region43: #{text_forward.1} parent=1 // pred_check_branch
      %72 = sbr.rel (0) target = $region45
    $region44: #{text_forward.1} parent=1 // pred_region
      %74 = dma.done [#allocation5], 1024
    $region45: #{text_forward.1} parent=1 // pred_fallthru
      _
    // Predicated region
    $region46: #{text_forward.1} parent=1 // pred_check
      _
    $region47: #{text_forward.1} parent=1 // pred_check_branch
      %76 = sbr.rel (0) target = $region49
    $region48: #{text_forward.1} parent=1 // pred_region
      %78 = dma.done [#allocation5], 1024
    $region49: #{text_forward.1} parent=1 // pred_fallthru
      _
    %v79 = vld [vmem:[%s2] sm:$0xff]
    %v80 = vld [vmem:[%s0] sm:$0xff]
    %v81 = vld [vmem:[%s0 + $0x8] sm:$0xff]
    %vm82 = vcmask 261120
    %v83 = vsel %vm82, %v80, 0.0
    %84 = vadd.xlane.f32.xlu0 %v83
    %v85 = vpop.xlane.xlu0 %84
    %v86 = vsel %vm82, %v81, 0.0
    %87 = vadd.xlane.f32.xlu0 %v86
    %v88 = vpop.xlane.xlu0 %87
    %v89 = vrcp.pop 32.0
    %v90 = vmul.f32 32.0, %v89
    %v91 = vsub.f32 1.0, %v90
    %v92 = vmul.f32 %v89, %v91
    %v93 = vadd.f32 %v89, %v92
    %vm94 = vweird.f32 %v89
    %v95 = vsel %vm94, %v89, %v93
    %v96 = vmul.f32 %v85, %v95
    %v97 = vmul.f32 %v88, %v95
    %v98 = vsub.f32 %v80, %v96
    %v99 = vsub.f32 %v81, %v97
    %v100 = vmul.f32 %v98, %v98
    %v101 = vmul.f32 %v99, %v99
    %v102 = vsel %vm82, %v100, 0.0
    %103 = vadd.xlane.f32.xlu0 %v102
    %v104 = vpop.xlane.xlu0 %103
    %v105 = vsel %vm82, %v101, 0.0
    %106 = vadd.xlane.f32.xlu0 %v105
    %v107 = vpop.xlane.xlu0 %106
    %v108 = vmul.f32 %v104, %v95
    %v109 = vmul.f32 %v107, %v95
    %v110 = vadd.f32 %v108, 1e-12
    %v111 = vadd.f32 %v109, 1e-12
    %v112 = vrsqrt.pop %v110
    %v113 = vmul.f32 %v112, %v110
    %v114 = vmul.f32 %v113, %v112
    %v115 = vmul.f32 0.5, %v114
    %v116 = vsub.f32 1.5, %v115
    %v117 = vmul.f32 %v112, %v116
    %vm118 = vweird.f32 %v110
    %vm119 = vweird.f32 %v112
    %vm120 = vmor %vm118, %vm119
    %v121 = vsel %vm120, %v112, %v117
    %v122 = vrsqrt.pop %v111
    %v123 = vmul.f32 %v122, %v111
    %v124 = vmul.f32 %v123, %v122
    %v125 = vmul.f32 0.5, %v124
    %v126 = vsub.f32 1.5, %v125
    %v127 = vmul.f32 %v122, %v126
    %vm128 = vweird.f32 %v111
    %vm129 = vweird.f32 %v122
    %vm130 = vmor %vm128, %vm129
    %v131 = vsel %vm130, %v122, %v127
    %v132 = vmul.f32 %v98, %v121
    %v133 = vmul.f32 %v99, %v131
    %v134 = vperm.slane %v79, 0
    %v135 = vmul.f32 %v132, %v134
    %v136 = vmul.f32 %v133, %v134
    %v137 = vperm.slane %v79, 1
    %v138 = vadd.f32 %v135, %v137
    %v139 = vadd.f32 %v136, %v137
    %v140 = vld [vmem:[%s1] sm:$0x1]
    %v141 = vld [vmem:[%s1 + $0x1] sm:$0x1]
    %v144 = vperm.slane %v140, 0
    %v145 = vperm.slane %v141, 0
    %v148 = vld [vmem:[%s7] sm:$0xff]
    %v149 = vld [vmem:[#allocation2] sm:$0xff]
    %v150 = vld [vmem:[#allocation2 + $0x8] sm:$0xff]
    %v151 = vld [vmem:[#allocation2 + $0x10] sm:$0xff]
    %v152 = vld [vmem:[#allocation2 + $0x18] sm:$0xff]
    %v153 = vperm.slane %v148, 0
    %v155 = vsel %vm82, %v138, 0
    %v158 = vsel %vm82, %v139, 0
    %160 = vmatpush.msra.mxu0 0.0
    %161 = vmatpush.msra.mxu0 0.0
    %162 = vmatpush.msra.mxu0 0.0
    %163 = vmatpush.msra.mxu0 0.0
    %164 = vmatpush.msra.mxu0 0.0
    %165 = vmatpush.msra.mxu0 0.0
    %166 = vmatpush.msra.mxu0 0.0
    %167 = vmatpush.msra.mxu0 0.0
    %168 = vmatpush.msra.mxu0 0.0
    %169 = vmatpush.msra.mxu0 0.0
    %170 = vmatpush.msra.mxu0 0.0
    %171 = vmatpush.msra.mxu0 0.0
    %172 = vmatpush.msra.mxu0 %v152
    %173 = vmatpush.msra.mxu0 %v151
    %174 = vmatpush.msra.mxu0 %v150
    %175 = vmatpush.msra.mxu0 %v149
    %176 = vmatmul.f32.gmra.mxu0 %v155
    %v177 = vpop.f32.mrf.mxu0
    %v178 = vadd.f32 %v153, %v177
    %179 = vmatmul.f32.gmra.mxu0 %v158
    %v180 = vpop.f32.mrf.mxu0
    %v181 = vadd.f32 %v153, %v180
    %182 = vdwg.mxu0
    %184 = vrot.lane.b32.xlu0 %v178, 96
    %v185 = vpop.permute.xlu0 %184
    %vm186 = vcmask 64512
    %v187 = vsel %vm186, %v178, 0
    %v189 = vsel %vm186, %v185, 0
    %191 = vmatpush.xpose.msra.mxu0 0.0
    %192 = vmatpush.xpose.msra.mxu0 0.0
    %193 = vmatpush.xpose.msra.mxu0 0.0
    %194 = vmatpush.xpose.msra.mxu0 0.0
    %195 = vmatpush.xpose.msra.mxu0 0.0
    %196 = vmatpush.xpose.msra.mxu0 0.0
    %197 = vmatpush.xpose.msra.mxu0 0.0
    %198 = vmatpush.xpose.msra.mxu0 0.0
    %199 = vmatpush.xpose.msra.mxu0 0.0
    %200 = vmatpush.xpose.msra.mxu0 0.0
    %201 = vmatpush.xpose.msra.mxu0 0.0
    %202 = vmatpush.xpose.msra.mxu0 0.0
    %203 = vmatpush.xpose.msra.mxu0 0.0
    %204 = vmatpush.xpose.msra.mxu0 0.0
    %205 = vmatpush.xpose.msra.mxu0 0.0
    %206 = vmatpush.xpose.msra.mxu0 %v189
    %207 = vmatmul.f32.gmra.mxu0 %v187
    %v208 = vpop.f32.mrf.mxu0
    %v209 = vadd.f32 %v144, %v208
    %210 = vdwg.mxu0
    %212 = vrot.lane.b32.xlu0 %v181, 96
    %v213 = vpop.permute.xlu0 %212
    %v214 = vsel %vm186, %v181, 0
    %v216 = vsel %vm186, %v213, 0
    %218 = vmatpush.xpose.msra.mxu0 0.0
    %219 = vmatpush.xpose.msra.mxu0 0.0
    %220 = vmatpush.xpose.msra.mxu0 0.0
    %221 = vmatpush.xpose.msra.mxu0 0.0
    %222 = vmatpush.xpose.msra.mxu0 0.0
    %223 = vmatpush.xpose.msra.mxu0 0.0
    %224 = vmatpush.xpose.msra.mxu0 0.0
    %225 = vmatpush.xpose.msra.mxu0 0.0
    %226 = vmatpush.xpose.msra.mxu0 0.0
    %227 = vmatpush.xpose.msra.mxu0 0.0
    %228 = vmatpush.xpose.msra.mxu0 0.0
    %229 = vmatpush.xpose.msra.mxu0 0.0
    %230 = vmatpush.xpose.msra.mxu0 0.0
    %231 = vmatpush.xpose.msra.mxu0 0.0
    %232 = vmatpush.xpose.msra.mxu0 0.0
    %233 = vmatpush.xpose.msra.mxu0 %v216
    %234 = vmatmul.f32.gmra.mxu0 %v214
    %v235 = vpop.f32.mrf.mxu0
    %v236 = vadd.f32 %v145, %v235
    %237 = vdwg.mxu0
    %v238 = vsel %vm186, %v209, -inf
    %239 = vmax.xlane.f32.xlu0 %v238
    %v240 = vpop.xlane.xlu0 %239
    %v241 = vsel %vm186, %v236, -inf
    %242 = vmax.xlane.f32.xlu0 %v241
    %v243 = vpop.xlane.xlu0 %242
    %v244 = vsub.f32 %v209, %v240
    %v245 = vsub.f32 %v236, %v243
    %v246 = vmul.f32 %v244, 1.442695
    %v247 = vpow.pop %v246
    %v248 = vmul.f32 %v245, 1.442695
    %v249 = vpow.pop %v248
    %v250 = vsel %vm186, %v247, 0.0
    %251 = vadd.xlane.f32.xlu0 %v250
    %v252 = vpop.xlane.xlu0 %251
    %v253 = vsel %vm186, %v249, 0.0
    %254 = vadd.xlane.f32.xlu0 %v253
    %v255 = vpop.xlane.xlu0 %254
    %v256 = vrcp.pop %v252
    %v257 = vrcp.pop %v255
    %v258 = vmul.f32 %v247, %v256
    %v259 = vmul.f32 %v249, %v257
    %260 = vrot.lane.b32.xlu0 %v178, 64
    %v261 = vpop.permute.xlu0 %260
    %v264 = vsel %vm186, %v258, 0
    %266 = vmatpush.msra.mxu0 0.0
    %267 = vmatpush.msra.mxu0 0.0
    %268 = vmatpush.msra.mxu0 0.0
    %269 = vmatpush.msra.mxu0 0.0
    %270 = vmatpush.msra.mxu0 0.0
    %271 = vmatpush.msra.mxu0 0.0
    %272 = vmatpush.msra.mxu0 0.0
    %273 = vmatpush.msra.mxu0 0.0
    %274 = vmatpush.msra.mxu0 0.0
    %275 = vmatpush.msra.mxu0 0.0
    %276 = vmatpush.msra.mxu0 0.0
    %277 = vmatpush.msra.mxu0 0.0
    %278 = vmatpush.msra.mxu0 0.0
    %279 = vmatpush.msra.mxu0 0.0
    %280 = vmatpush.msra.mxu0 0.0
    %281 = vmatpush.msra.mxu0 %v261
    %282 = vmatmul.f32.gmra.mxu0 %v264
    %v283 = vpop.f32.mrf.mxu0
    %v284 = vadd.f32 0.0, %v283
    %285 = vdwg.mxu0
    %286 = vrot.lane.b32.xlu0 %v181, 64
    %v287 = vpop.permute.xlu0 %286
    %v290 = vsel %vm186, %v259, 0
    %292 = vmatpush.msra.mxu0 0.0
    %293 = vmatpush.msra.mxu0 0.0
    %294 = vmatpush.msra.mxu0 0.0
    %295 = vmatpush.msra.mxu0 0.0
    %296 = vmatpush.msra.mxu0 0.0
    %297 = vmatpush.msra.mxu0 0.0
    %298 = vmatpush.msra.mxu0 0.0
    %299 = vmatpush.msra.mxu0 0.0
    %300 = vmatpush.msra.mxu0 0.0
    %301 = vmatpush.msra.mxu0 0.0
    %302 = vmatpush.msra.mxu0 0.0
    %303 = vmatpush.msra.mxu0 0.0
    %304 = vmatpush.msra.mxu0 0.0
    %305 = vmatpush.msra.mxu0 0.0
    %306 = vmatpush.msra.mxu0 0.0
    %307 = vmatpush.msra.mxu0 %v287
    %308 = vmatmul.f32.gmra.mxu0 %v290
    %v309 = vpop.f32.mrf.mxu0
    %v310 = vadd.f32 0.0, %v309
    %311 = vdwg.mxu0
    %312 = vrot.lane.b32.xlu0 %v178, 120
    %v313 = vpop.permute.xlu0 %312
    %314 = vrot.lane.b32.xlu0 %v178, 88
    %v315 = vpop.permute.xlu0 %314
    %v316 = vsel %vm186, %v313, 0
    %v318 = vsel %vm186, %v315, 0
    %320 = vmatpush.xpose.msra.mxu0 0.0
    %321 = vmatpush.xpose.msra.mxu0 0.0
    %322 = vmatpush.xpose.msra.mxu0 0.0
    %323 = vmatpush.xpose.msra.mxu0 0.0
    %324 = vmatpush.xpose.msra.mxu0 0.0
    %325 = vmatpush.xpose.msra.mxu0 0.0
    %326 = vmatpush.xpose.msra.mxu0 0.0
    %327 = vmatpush.xpose.msra.mxu0 0.0
    %328 = vmatpush.xpose.msra.mxu0 0.0
    %329 = vmatpush.xpose.msra.mxu0 0.0
    %330 = vmatpush.xpose.msra.mxu0 0.0
    %331 = vmatpush.xpose.msra.mxu0 0.0
    %332 = vmatpush.xpose.msra.mxu0 0.0
    %333 = vmatpush.xpose.msra.mxu0 0.0
    %334 = vmatpush.xpose.msra.mxu0 0.0
    %335 = vmatpush.xpose.msra.mxu0 %v318
    %336 = vmatmul.f32.gmra.mxu0 %v316
    %v337 = vpop.f32.mrf.mxu0
    %v338 = vadd.f32 %v144, %v337
    %339 = vdwg.mxu0
    %340 = vrot.lane.b32.xlu0 %v181, 120
    %v341 = vpop.permute.xlu0 %340
    %342 = vrot.lane.b32.xlu0 %v181, 88
    %v343 = vpop.permute.xlu0 %342
    %v344 = vsel %vm186, %v341, 0
    %v346 = vsel %vm186, %v343, 0
    %348 = vmatpush.xpose.msra.mxu0 0.0
    %349 = vmatpush.xpose.msra.mxu0 0.0
    %350 = vmatpush.xpose.msra.mxu0 0.0
    %351 = vmatpush.xpose.msra.mxu0 0.0
    %352 = vmatpush.xpose.msra.mxu0 0.0
    %353 = vmatpush.xpose.msra.mxu0 0.0
    %354 = vmatpush.xpose.msra.mxu0 0.0
    %355 = vmatpush.xpose.msra.mxu0 0.0
    %356 = vmatpush.xpose.msra.mxu0 0.0
    %357 = vmatpush.xpose.msra.mxu0 0.0
    %358 = vmatpush.xpose.msra.mxu0 0.0
    %359 = vmatpush.xpose.msra.mxu0 0.0
    %360 = vmatpush.xpose.msra.mxu0 0.0
    %361 = vmatpush.xpose.msra.mxu0 0.0
    %362 = vmatpush.xpose.msra.mxu0 0.0
    %363 = vmatpush.xpose.msra.mxu0 %v346
    %364 = vmatmul.f32.gmra.mxu0 %v344
    %v365 = vpop.f32.mrf.mxu0
    %v366 = vadd.f32 %v145, %v365
    %367 = vdwg.mxu0
    %v368 = vsel %vm186, %v338, -inf
    %369 = vmax.xlane.f32.xlu0 %v368
    %v370 = vpop.xlane.xlu0 %369
    %v371 = vsel %vm186, %v366, -inf
    %372 = vmax.xlane.f32.xlu0 %v371
    %v373 = vpop.xlane.xlu0 %372
    %v374 = vsub.f32 %v338, %v370
    %v375 = vsub.f32 %v366, %v373
    %v376 = vmul.f32 %v374, 1.442695
    %v377 = vpow.pop %v376
    %v378 = vmul.f32 %v375, 1.442695
    %v379 = vpow.pop %v378
    %v380 = vsel %vm186, %v377, 0.0
    %381 = vadd.xlane.f32.xlu0 %v380
    %v382 = vpop.xlane.xlu0 %381
    %v383 = vsel %vm186, %v379, 0.0
    %384 = vadd.xlane.f32.xlu0 %v383
    %v385 = vpop.xlane.xlu0 %384
    %v386 = vrcp.pop %v382
    %v387 = vrcp.pop %v385
    %v388 = vmul.f32 %v377, %v386
    %v389 = vmul.f32 %v379, %v387
    %390 = vrot.lane.b32.xlu0 %v178, 56
    %v391 = vpop.permute.xlu0 %390
    %v394 = vsel %vm186, %v388, 0
    %396 = vmatpush.msra.mxu0 0.0
    %397 = vmatpush.msra.mxu0 0.0
    %398 = vmatpush.msra.mxu0 0.0
    %399 = vmatpush.msra.mxu0 0.0
    %400 = vmatpush.msra.mxu0 0.0
    %401 = vmatpush.msra.mxu0 0.0
    %402 = vmatpush.msra.mxu0 0.0
    %403 = vmatpush.msra.mxu0 0.0
    %404 = vmatpush.msra.mxu0 0.0
    %405 = vmatpush.msra.mxu0 0.0
    %406 = vmatpush.msra.mxu0 0.0
    %407 = vmatpush.msra.mxu0 0.0
    %408 = vmatpush.msra.mxu0 0.0
    %409 = vmatpush.msra.mxu0 0.0
    %410 = vmatpush.msra.mxu0 0.0
    %411 = vmatpush.msra.mxu0 %v391
    %412 = vmatmul.f32.gmra.mxu0 %v394
    %v413 = vpop.f32.mrf.mxu0
    %v414 = vadd.f32 0.0, %v413
    %415 = vdwg.mxu0
    %416 = vrot.lane.b32.xlu0 %v181, 56
    %v417 = vpop.permute.xlu0 %416
    %v420 = vsel %vm186, %v389, 0
    %422 = vmatpush.msra.mxu0 0.0
    %423 = vmatpush.msra.mxu0 0.0
    %424 = vmatpush.msra.mxu0 0.0
    %425 = vmatpush.msra.mxu0 0.0
    %426 = vmatpush.msra.mxu0 0.0
    %427 = vmatpush.msra.mxu0 0.0
    %428 = vmatpush.msra.mxu0 0.0
    %429 = vmatpush.msra.mxu0 0.0
    %430 = vmatpush.msra.mxu0 0.0
    %431 = vmatpush.msra.mxu0 0.0
    %432 = vmatpush.msra.mxu0 0.0
    %433 = vmatpush.msra.mxu0 0.0
    %434 = vmatpush.msra.mxu0 0.0
    %435 = vmatpush.msra.mxu0 0.0
    %436 = vmatpush.msra.mxu0 0.0
    %437 = vmatpush.msra.mxu0 %v417
    %438 = vmatmul.f32.gmra.mxu0 %v420
    %v439 = vpop.f32.mrf.mxu0
    %v440 = vadd.f32 0.0, %v439
    %441 = vdwg.mxu0
    %442 = vrot.lane.b32.xlu0 %v178, 112
    %v443 = vpop.permute.xlu0 %442
    %444 = vrot.lane.b32.xlu0 %v178, 80
    %v445 = vpop.permute.xlu0 %444
    %v446 = vsel %vm186, %v443, 0
    %v448 = vsel %vm186, %v445, 0
    %450 = vmatpush.xpose.msra.mxu0 0.0
    %451 = vmatpush.xpose.msra.mxu0 0.0
    %452 = vmatpush.xpose.msra.mxu0 0.0
    %453 = vmatpush.xpose.msra.mxu0 0.0
    %454 = vmatpush.xpose.msra.mxu0 0.0
    %455 = vmatpush.xpose.msra.mxu0 0.0
    %456 = vmatpush.xpose.msra.mxu0 0.0
    %457 = vmatpush.xpose.msra.mxu0 0.0
    %458 = vmatpush.xpose.msra.mxu0 0.0
    %459 = vmatpush.xpose.msra.mxu0 0.0
    %460 = vmatpush.xpose.msra.mxu0 0.0
    %461 = vmatpush.xpose.msra.mxu0 0.0
    %462 = vmatpush.xpose.msra.mxu0 0.0
    %463 = vmatpush.xpose.msra.mxu0 0.0
    %464 = vmatpush.xpose.msra.mxu0 0.0
    %465 = vmatpush.xpose.msra.mxu0 %v448
    %466 = vmatmul.f32.gmra.mxu0 %v446
    %v467 = vpop.f32.mrf.mxu0
    %v468 = vadd.f32 %v144, %v467
    %469 = vdwg.mxu0
    %470 = vrot.lane.b32.xlu0 %v181, 112
    %v471 = vpop.permute.xlu0 %470
    %472 = vrot.lane.b32.xlu0 %v181, 80
    %v473 = vpop.permute.xlu0 %472
    %v474 = vsel %vm186, %v471, 0
    %v476 = vsel %vm186, %v473, 0
    %478 = vmatpush.xpose.msra.mxu0 0.0
    %479 = vmatpush.xpose.msra.mxu0 0.0
    %480 = vmatpush.xpose.msra.mxu0 0.0
    %481 = vmatpush.xpose.msra.mxu0 0.0
    %482 = vmatpush.xpose.msra.mxu0 0.0
    %483 = vmatpush.xpose.msra.mxu0 0.0
    %484 = vmatpush.xpose.msra.mxu0 0.0
    %485 = vmatpush.xpose.msra.mxu0 0.0
    %486 = vmatpush.xpose.msra.mxu0 0.0
    %487 = vmatpush.xpose.msra.mxu0 0.0
    %488 = vmatpush.xpose.msra.mxu0 0.0
    %489 = vmatpush.xpose.msra.mxu0 0.0
    %490 = vmatpush.xpose.msra.mxu0 0.0
    %491 = vmatpush.xpose.msra.mxu0 0.0
    %492 = vmatpush.xpose.msra.mxu0 0.0
    %493 = vmatpush.xpose.msra.mxu0 %v476
    %494 = vmatmul.f32.gmra.mxu0 %v474
    %v495 = vpop.f32.mrf.mxu0
    %v496 = vadd.f32 %v145, %v495
    %497 = vdwg.mxu0
    %v498 = vsel %vm186, %v468, -inf
    %499 = vmax.xlane.f32.xlu0 %v498
    %v500 = vpop.xlane.xlu0 %499
    %v501 = vsel %vm186, %v496, -inf
    %502 = vmax.xlane.f32.xlu0 %v501
    %v503 = vpop.xlane.xlu0 %502
    %v504 = vsub.f32 %v468, %v500
    %v505 = vsub.f32 %v496, %v503
    %v506 = vmul.f32 %v504, 1.442695
    %v507 = vpow.pop %v506
    %v508 = vmul.f32 %v505, 1.442695
    %v509 = vpow.pop %v508
    %v510 = vsel %vm186, %v507, 0.0
    %511 = vadd.xlane.f32.xlu0 %v510
    %v512 = vpop.xlane.xlu0 %511
    %v513 = vsel %vm186, %v509, 0.0
    %514 = vadd.xlane.f32.xlu0 %v513
    %v515 = vpop.xlane.xlu0 %514
    %v516 = vrcp.pop %v512
    %v517 = vrcp.pop %v515
    %v518 = vmul.f32 %v507, %v516
    %v519 = vmul.f32 %v509, %v517
    %520 = vrot.lane.b32.xlu0 %v178, 48
    %v521 = vpop.permute.xlu0 %520
    %v524 = vsel %vm186, %v518, 0
    %526 = vmatpush.msra.mxu0 0.0
    %527 = vmatpush.msra.mxu0 0.0
    %528 = vmatpush.msra.mxu0 0.0
    %529 = vmatpush.msra.mxu0 0.0
    %530 = vmatpush.msra.mxu0 0.0
    %531 = vmatpush.msra.mxu0 0.0
    %532 = vmatpush.msra.mxu0 0.0
    %533 = vmatpush.msra.mxu0 0.0
    %534 = vmatpush.msra.mxu0 0.0
    %535 = vmatpush.msra.mxu0 0.0
    %536 = vmatpush.msra.mxu0 0.0
    %537 = vmatpush.msra.mxu0 0.0
    %538 = vmatpush.msra.mxu0 0.0
    %539 = vmatpush.msra.mxu0 0.0
    %540 = vmatpush.msra.mxu0 0.0
    %541 = vmatpush.msra.mxu0 %v521
    %542 = vmatmul.f32.gmra.mxu0 %v524
    %v543 = vpop.f32.mrf.mxu0
    %v544 = vadd.f32 0.0, %v543
    %545 = vdwg.mxu0
    %546 = vrot.lane.b32.xlu0 %v181, 48
    %v547 = vpop.permute.xlu0 %546
    %v550 = vsel %vm186, %v519, 0
    %552 = vmatpush.msra.mxu0 0.0
    %553 = vmatpush.msra.mxu0 0.0
    %554 = vmatpush.msra.mxu0 0.0
    %555 = vmatpush.msra.mxu0 0.0
    %556 = vmatpush.msra.mxu0 0.0
    %557 = vmatpush.msra.mxu0 0.0
    %558 = vmatpush.msra.mxu0 0.0
    %559 = vmatpush.msra.mxu0 0.0
    %560 = vmatpush.msra.mxu0 0.0
    %561 = vmatpush.msra.mxu0 0.0
    %562 = vmatpush.msra.mxu0 0.0
    %563 = vmatpush.msra.mxu0 0.0
    %564 = vmatpush.msra.mxu0 0.0
    %565 = vmatpush.msra.mxu0 0.0
    %566 = vmatpush.msra.mxu0 0.0
    %567 = vmatpush.msra.mxu0 %v547
    %568 = vmatmul.f32.gmra.mxu0 %v550
    %v569 = vpop.f32.mrf.mxu0
    %v570 = vadd.f32 0.0, %v569
    %571 = vdwg.mxu0
    %572 = vrot.lane.b32.xlu0 %v178, 104
    %v573 = vpop.permute.xlu0 %572
    %574 = vrot.lane.b32.xlu0 %v178, 72
    %v575 = vpop.permute.xlu0 %574
    %v576 = vsel %vm186, %v573, 0
    %v578 = vsel %vm186, %v575, 0
    %580 = vmatpush.xpose.msra.mxu0 0.0
    %581 = vmatpush.xpose.msra.mxu0 0.0
    %582 = vmatpush.xpose.msra.mxu0 0.0
    %583 = vmatpush.xpose.msra.mxu0 0.0
    %584 = vmatpush.xpose.msra.mxu0 0.0
    %585 = vmatpush.xpose.msra.mxu0 0.0
    %586 = vmatpush.xpose.msra.mxu0 0.0
    %587 = vmatpush.xpose.msra.mxu0 0.0
    %588 = vmatpush.xpose.msra.mxu0 0.0
    %589 = vmatpush.xpose.msra.mxu0 0.0
    %590 = vmatpush.xpose.msra.mxu0 0.0
    %591 = vmatpush.xpose.msra.mxu0 0.0
    %592 = vmatpush.xpose.msra.mxu0 0.0
    %593 = vmatpush.xpose.msra.mxu0 0.0
    %594 = vmatpush.xpose.msra.mxu0 0.0
    %595 = vmatpush.xpose.msra.mxu0 %v578
    %596 = vmatmul.f32.gmra.mxu0 %v576
    %v597 = vpop.f32.mrf.mxu0
    %v598 = vadd.f32 %v144, %v597
    %599 = vdwg.mxu0
    %600 = vrot.lane.b32.xlu0 %v181, 104
    %v601 = vpop.permute.xlu0 %600
    %602 = vrot.lane.b32.xlu0 %v181, 72
    %v603 = vpop.permute.xlu0 %602
    %v604 = vsel %vm186, %v601, 0
    %v606 = vsel %vm186, %v603, 0
    %608 = vmatpush.xpose.msra.mxu0 0.0
    %609 = vmatpush.xpose.msra.mxu0 0.0
    %610 = vmatpush.xpose.msra.mxu0 0.0
    %611 = vmatpush.xpose.msra.mxu0 0.0
    %612 = vmatpush.xpose.msra.mxu0 0.0
    %613 = vmatpush.xpose.msra.mxu0 0.0
    %614 = vmatpush.xpose.msra.mxu0 0.0
    %615 = vmatpush.xpose.msra.mxu0 0.0
    %616 = vmatpush.xpose.msra.mxu0 0.0
    %617 = vmatpush.xpose.msra.mxu0 0.0
    %618 = vmatpush.xpose.msra.mxu0 0.0
    %619 = vmatpush.xpose.msra.mxu0 0.0
    %620 = vmatpush.xpose.msra.mxu0 0.0
    %621 = vmatpush.xpose.msra.mxu0 0.0
    %622 = vmatpush.xpose.msra.mxu0 0.0
    %623 = vmatpush.xpose.msra.mxu0 %v606
    %624 = vmatmul.f32.gmra.mxu0 %v604
    %v625 = vpop.f32.mrf.mxu0
    %v626 = vadd.f32 %v145, %v625
    %627 = vdwg.mxu0
    %v628 = vsel %vm186, %v598, -inf
    %629 = vmax.xlane.f32.xlu0 %v628
    %v630 = vpop.xlane.xlu0 %629
    %v631 = vsel %vm186, %v626, -inf
    %632 = vmax.xlane.f32.xlu0 %v631
    %v633 = vpop.xlane.xlu0 %632
    %v634 = vsub.f32 %v598, %v630
    %v635 = vsub.f32 %v626, %v633
    %v636 = vmul.f32 %v634, 1.442695
    %v637 = vpow.pop %v636
    %v638 = vmul.f32 %v635, 1.442695
    %v639 = vpow.pop %v638
    %v640 = vsel %vm186, %v637, 0.0
    %641 = vadd.xlane.f32.xlu0 %v640
    %v642 = vpop.xlane.xlu0 %641
    %v643 = vsel %vm186, %v639, 0.0
    %644 = vadd.xlane.f32.xlu0 %v643
    %v645 = vpop.xlane.xlu0 %644
    %v646 = vrcp.pop %v642
    %v647 = vrcp.pop %v645
    %v648 = vmul.f32 %v637, %v646
    %v649 = vmul.f32 %v639, %v647
    %650 = vrot.lane.b32.xlu0 %v178, 40
    %v651 = vpop.permute.xlu0 %650
    %v654 = vsel %vm186, %v648, 0
    %656 = vmatpush.msra.mxu0 0.0
    %657 = vmatpush.msra.mxu0 0.0
    %658 = vmatpush.msra.mxu0 0.0
    %659 = vmatpush.msra.mxu0 0.0
    %660 = vmatpush.msra.mxu0 0.0
    %661 = vmatpush.msra.mxu0 0.0
    %662 = vmatpush.msra.mxu0 0.0
    %663 = vmatpush.msra.mxu0 0.0
    %664 = vmatpush.msra.mxu0 0.0
    %665 = vmatpush.msra.mxu0 0.0
    %666 = vmatpush.msra.mxu0 0.0
    %667 = vmatpush.msra.mxu0 0.0
    %668 = vmatpush.msra.mxu0 0.0
    %669 = vmatpush.msra.mxu0 0.0
    %670 = vmatpush.msra.mxu0 0.0
    %671 = vmatpush.msra.mxu0 %v651
    %672 = vmatmul.f32.gmra.mxu0 %v654
    %v673 = vpop.f32.mrf.mxu0
    %v674 = vadd.f32 0.0, %v673
    %675 = vdwg.mxu0
    %676 = vrot.lane.b32.xlu0 %v181, 40
    %v677 = vpop.permute.xlu0 %676
    %v680 = vsel %vm186, %v649, 0
    %682 = vmatpush.msra.mxu0 0.0
    %683 = vmatpush.msra.mxu0 0.0
    %684 = vmatpush.msra.mxu0 0.0
    %685 = vmatpush.msra.mxu0 0.0
    %686 = vmatpush.msra.mxu0 0.0
    %687 = vmatpush.msra.mxu0 0.0
    %688 = vmatpush.msra.mxu0 0.0
    %689 = vmatpush.msra.mxu0 0.0
    %690 = vmatpush.msra.mxu0 0.0
    %691 = vmatpush.msra.mxu0 0.0
    %692 = vmatpush.msra.mxu0 0.0
    %693 = vmatpush.msra.mxu0 0.0
    %694 = vmatpush.msra.mxu0 0.0
    %695 = vmatpush.msra.mxu0 0.0
    %696 = vmatpush.msra.mxu0 0.0
    %697 = vmatpush.msra.mxu0 %v677
    %698 = vmatmul.f32.gmra.mxu0 %v680
    %v699 = vpop.f32.mrf.mxu0
    %v700 = vadd.f32 0.0, %v699
    %701 = vdwg.mxu0
    %704 = vrot.lane.b32.xlu0 %v414, 8
    %v705 = vpop.permute.xlu0 %704
    %706 = vrot.lane.b32.xlu0 %v440, 8
    %v707 = vpop.permute.xlu0 %706
    %712 = vrot.lane.b32.xlu0 %v544, 16
    %v713 = vpop.permute.xlu0 %712
    %714 = vrot.lane.b32.xlu0 %v570, 16
    %v715 = vpop.permute.xlu0 %714
    %720 = vrot.lane.b32.xlu0 %v674, 24
    %v721 = vpop.permute.xlu0 %720
    %722 = vrot.lane.b32.xlu0 %v700, 24
    %v723 = vpop.permute.xlu0 %722
    %v726 = vsel %vm186, %v284, %v705
    %v727 = vsel %vm186, %v310, %v707
    %vm728 = vcmask 130048
    %v729 = vsel %vm728, %v726, %v713
    %v730 = vsel %vm728, %v727, %v715
    %vm731 = vcmask 195584
    %v732 = vsel %vm731, %v729, %v721
    %v733 = vsel %vm731, %v730, %v723
    %v734 = vld [vmem:[#allocation4] sm:$0xff]
    %v735 = vld [vmem:[#allocation4 + $0x8] sm:$0xff]
    %v736 = vld [vmem:[#allocation4 + $0x10] sm:$0xff]
    %v737 = vld [vmem:[#allocation4 + $0x18] sm:$0xff]
    %v738 = vperm.slane %v148, 1
    %v740 = vsel %vm82, %v732, 0
    %v743 = vsel %vm82, %v733, 0
    %745 = vmatpush.msra.mxu0 0.0
    %746 = vmatpush.msra.mxu0 0.0
    %747 = vmatpush.msra.mxu0 0.0
    %748 = vmatpush.msra.mxu0 0.0
    %749 = vmatpush.msra.mxu0 0.0
    %750 = vmatpush.msra.mxu0 0.0
    %751 = vmatpush.msra.mxu0 0.0
    %752 = vmatpush.msra.mxu0 0.0
    %753 = vmatpush.msra.mxu0 0.0
    %754 = vmatpush.msra.mxu0 0.0
    %755 = vmatpush.msra.mxu0 0.0
    %756 = vmatpush.msra.mxu0 0.0
    %757 = vmatpush.msra.mxu0 %v737
    %758 = vmatpush.msra.mxu0 %v736
    %759 = vmatpush.msra.mxu0 %v735
    %760 = vmatpush.msra.mxu0 %v734
    %761 = vmatmul.f32.gmra.mxu0 %v740
    %v762 = vpop.f32.mrf.mxu0
    %v763 = vadd.f32 %v738, %v762
    %764 = vmatmul.f32.gmra.mxu0 %v743
    %v765 = vpop.f32.mrf.mxu0
    %v766 = vadd.f32 %v738, %v765
    %767 = vdwg.mxu0
    %v768 = vadd.f32 %v763, %v138
    %v769 = vadd.f32 %v766, %v139
    %v770 = vsel %vm82, %v768, 0.0
    %771 = vadd.xlane.f32.xlu0 %v770
    %v772 = vpop.xlane.xlu0 %771
    %v773 = vsel %vm82, %v769, 0.0
    %774 = vadd.xlane.f32.xlu0 %v773
    %v775 = vpop.xlane.xlu0 %774
    %v776 = vmul.f32 %v772, %v95
    %v777 = vmul.f32 %v775, %v95
    %v778 = vsub.f32 %v768, %v776
    %v779 = vsub.f32 %v769, %v777
    %v780 = vmul.f32 %v778, %v778
    %v781 = vmul.f32 %v779, %v779
    %v782 = vsel %vm82, %v780, 0.0
    %783 = vadd.xlane.f32.xlu0 %v782
    %v784 = vpop.xlane.xlu0 %783
    %v785 = vsel %vm82, %v781, 0.0
    %786 = vadd.xlane.f32.xlu0 %v785
    %v787 = vpop.xlane.xlu0 %786
    %v788 = vmul.f32 %v784, %v95
    %v789 = vmul.f32 %v787, %v95
    %v790 = vadd.f32 %v788, 1e-12
    %v791 = vadd.f32 %v789, 1e-12
    %v792 = vrsqrt.pop %v790
    %v793 = vmul.f32 %v792, %v790
    %v794 = vmul.f32 %v793, %v792
    %v795 = vmul.f32 0.5, %v794
    %v796 = vsub.f32 1.5, %v795
    %v797 = vmul.f32 %v792, %v796
    %vm798 = vweird.f32 %v790
    %vm799 = vweird.f32 %v792
    %vm800 = vmor %vm798, %vm799
    %v801 = vsel %vm800, %v792, %v797
    %v802 = vrsqrt.pop %v791
    %v803 = vmul.f32 %v802, %v791
    %v804 = vmul.f32 %v803, %v802
    %v805 = vmul.f32 0.5, %v804
    %v806 = vsub.f32 1.5, %v805
    %v807 = vmul.f32 %v802, %v806
    %vm808 = vweird.f32 %v791
    %vm809 = vweird.f32 %v802
    %vm810 = vmor %vm808, %vm809
    %v811 = vsel %vm810, %v802, %v807
    %v812 = vmul.f32 %v778, %v801
    %v813 = vmul.f32 %v779, %v811
    %v814 = vperm.slane %v148, 2
    %v815 = vmul.f32 %v812, %v814
    %v816 = vmul.f32 %v813, %v814
    %v817 = vperm.slane %v148, 3
    %v818 = vadd.f32 %v815, %v817
    %v819 = vadd.f32 %v816, %v817
    %v820 = vld [vmem:[#allocation6] sm:$0xff]
    %v821 = vld [vmem:[#allocation6 + $0x8] sm:$0xff]
    %v822 = vld [vmem:[#allocation6 + $0x10] sm:$0xff]
    %v823 = vld [vmem:[#allocation6 + $0x18] sm:$0xff]
    %v824 = vperm.slane %v148, 4
    %v826 = vsel %vm82, %v818, 0
    %v829 = vsel %vm82, %v819, 0
    %831 = vmatpush.msra.mxu0 0.0
    %832 = vmatpush.msra.mxu0 0.0
    %833 = vmatpush.msra.mxu0 0.0
    %834 = vmatpush.msra.mxu0 0.0
    %835 = vmatpush.msra.mxu0 0.0
    %836 = vmatpush.msra.mxu0 0.0
    %837 = vmatpush.msra.mxu0 0.0
    %838 = vmatpush.msra.mxu0 0.0
    %839 = vmatpush.msra.mxu0 0.0
    %840 = vmatpush.msra.mxu0 0.0
    %841 = vmatpush.msra.mxu0 0.0
    %842 = vmatpush.msra.mxu0 0.0
    %843 = vmatpush.msra.mxu0 %v823
    %844 = vmatpush.msra.mxu0 %v822
    %845 = vmatpush.msra.mxu0 %v821
    %846 = vmatpush.msra.mxu0 %v820
    %847 = vmatmul.f32.gmra.mxu0 %v826
    %v848 = vpop.f32.mrf.mxu0
    %v849 = vadd.f32 %v824, %v848
    %850 = vmatmul.f32.gmra.mxu0 %v829
    %v851 = vpop.f32.mrf.mxu0
    %v852 = vadd.f32 %v824, %v851
    %853 = vdwg.mxu0
    %v854 = vmul.f32 %v849, %v849
    %v855 = vmul.f32 %v852, %v852
    %v856 = vmul.f32 %v849, %v854
    %v857 = vmul.f32 %v852, %v855
    %v858 = vmul.f32 %v856, 0.044715
    %v859 = vmul.f32 %v857, 0.044715
    %v860 = vadd.f32 %v849, %v858
    %v861 = vadd.f32 %v852, %v859
    %v862 = vmul.f32 %v860, 0.7978846
    %v863 = vmul.f32 %v861, 0.7978846
    %v864 = vtanh.pop %v862
    %v865 = vtanh.pop %v863
    %v866 = vadd.f32 %v864, 1.0
    %v867 = vadd.f32 %v865, 1.0
    %v868 = vmul.f32 %v866, 0.5
    %v869 = vmul.f32 %v867, 0.5
    %v870 = vmul.f32 %v849, %v868
    %v871 = vmul.f32 %v852, %v869
    %v872 = vld [vmem:[%s6] sm:$0xff]
    %v873 = vld [vmem:[%s6 + $0x8] sm:$0xff]
    %v874 = vld [vmem:[%s6 + $0x10] sm:$0xff]
    %v875 = vld [vmem:[%s6 + $0x18] sm:$0xff]
    %v876 = vld [vmem:[%s6 + $0x20] sm:$0xff]
    %v877 = vld [vmem:[%s6 + $0x28] sm:$0xff]
    %v878 = vld [vmem:[%s6 + $0x30] sm:$0xff]
    %v879 = vld [vmem:[%s6 + $0x38] sm:$0xff]
    %v880 = vperm.slane %v148, 5
    %vm881 = vcmask 523264
    %v883 = vsel %vm881, %v870, 0
    %v886 = vsel %vm881, %v871, 0
    %888 = vmatpush.msra.mxu0 0.0
    %889 = vmatpush.msra.mxu0 0.0
    %890 = vmatpush.msra.mxu0 0.0
    %891 = vmatpush.msra.mxu0 0.0
    %892 = vmatpush.msra.mxu0 0.0
    %893 = vmatpush.msra.mxu0 0.0
    %894 = vmatpush.msra.mxu0 0.0
    %895 = vmatpush.msra.mxu0 0.0
    %896 = vmatpush.msra.mxu0 %v879
    %897 = vmatpush.msra.mxu0 %v878
    %898 = vmatpush.msra.mxu0 %v877
    %899 = vmatpush.msra.mxu0 %v876
    %900 = vmatpush.msra.mxu0 %v875
    %901 = vmatpush.msra.mxu0 %v874
    %902 = vmatpush.msra.mxu0 %v873
    %903 = vmatpush.msra.mxu0 %v872
    %904 = vmatmul.f32.gmra.mxu0 %v883
    %v905 = vpop.f32.mrf.mxu0
    %v906 = vadd.f32 %v880, %v905
    %907 = vmatmul.f32.gmra.mxu0 %v886
    %v908 = vpop.f32.mrf.mxu0
    %v909 = vadd.f32 %v880, %v908
    %910 = vdwg.mxu0
    %v911 = vadd.f32 %v906, %v818
    %v912 = vadd.f32 %v909, %v819
    %v913 = vsel %vm82, %v911, 0.0
    %914 = vadd.xlane.f32.xlu0 %v913
    %v915 = vpop.xlane.xlu0 %914
    %v916 = vsel %vm82, %v912, 0.0
    %917 = vadd.xlane.f32.xlu0 %v916
    %v918 = vpop.xlane.xlu0 %917
    %v919 = vmul.f32 %v915, %v95
    %v920 = vmul.f32 %v918, %v95
    %v921 = vsub.f32 %v911, %v919
    %v922 = vsub.f32 %v912, %v920
    %v923 = vmul.f32 %v921, %v921
    %v924 = vmul.f32 %v922, %v922
    %v925 = vsel %vm82, %v923, 0.0
    %926 = vadd.xlane.f32.xlu0 %v925
    %v927 = vpop.xlane.xlu0 %926
    %v928 = vsel %vm82, %v924, 0.0
    %929 = vadd.xlane.f32.xlu0 %v928
    %v930 = vpop.xlane.xlu0 %929
    %v931 = vmul.f32 %v927, %v95
    %v932 = vmul.f32 %v930, %v95
    %v933 = vadd.f32 %v931, 1e-12
    %v934 = vadd.f32 %v932, 1e-12
    %v935 = vrsqrt.pop %v933
    %v936 = vmul.f32 %v935, %v933
    %v937 = vmul.f32 %v936, %v935
    %v938 = vmul.f32 0.5, %v937
    %v939 = vsub.f32 1.5, %v938
    %v940 = vmul.f32 %v935, %v939
    %vm941 = vweird.f32 %v933
    %vm942 = vweird.f32 %v935
    %vm943 = vmor %vm941, %vm942
    %v944 = vsel %vm943, %v935, %v940
    %v945 = vrsqrt.pop %v934
    %v946 = vmul.f32 %v945, %v934
    %v947 = vmul.f32 %v946, %v945
    %v948 = vmul.f32 0.5, %v947
    %v949 = vsub.f32 1.5, %v948
    %v950 = vmul.f32 %v945, %v949
    %vm951 = vweird.f32 %v934
    %vm952 = vweird.f32 %v945
    %vm953 = vmor %vm951, %vm952
    %v954 = vsel %vm953, %v945, %v950
    %v955 = vmul.f32 %v921, %v944
    %v956 = vmul.f32 %v922, %v954
    %v957 = vperm.slane %v148, 6
    %v958 = vmul.f32 %v955, %v957
    %v959 = vmul.f32 %v956, %v957
    %v960 = vperm.slane %v148, 7
    %v961 = vadd.f32 %v958, %v960
    %v962 = vadd.f32 %v959, %v960
    %s963 = scalar_lea.vmem %s7, 8
    %v964 = vld [vmem:[%s963] sm:$0xff]
    %s965 = scalar_lea.vmem [#allocation2], 32
    %v966 = vld [vmem:[%s965] sm:$0xff]
    %v967 = vld [vmem:[%s965 + $0x8] sm:$0xff]
    %v968 = vld [vmem:[%s965 + $0x10] sm:$0xff]
    %v969 = vld [vmem:[%s965 + $0x18] sm:$0xff]
    %v970 = vperm.slane %v964, 0
    %v972 = vsel %vm82, %v961, 0
    %v975 = vsel %vm82, %v962, 0
    %977 = vmatpush.msra.mxu0 0.0
    %978 = vmatpush.msra.mxu0 0.0
    %979 = vmatpush.msra.mxu0 0.0
    %980 = vmatpush.msra.mxu0 0.0
    %981 = vmatpush.msra.mxu0 0.0
    %982 = vmatpush.msra.mxu0 0.0
    %983 = vmatpush.msra.mxu0 0.0
    %984 = vmatpush.msra.mxu0 0.0
    %985 = vmatpush.msra.mxu0 0.0
    %986 = vmatpush.msra.mxu0 0.0
    %987 = vmatpush.msra.mxu0 0.0
    %988 = vmatpush.msra.mxu0 0.0
    %989 = vmatpush.msra.mxu0 %v969
    %990 = vmatpush.msra.mxu0 %v968
    %991 = vmatpush.msra.mxu0 %v967
    %992 = vmatpush.msra.mxu0 %v966
    %993 = vmatmul.f32.gmra.mxu0 %v972
    %v994 = vpop.f32.mrf.mxu0
    %v995 = vadd.f32 %v970, %v994
    %996 = vmatmul.f32.gmra.mxu0 %v975
    %v997 = vpop.f32.mrf.mxu0
    %v998 = vadd.f32 %v970, %v997
    %999 = vdwg.mxu0
    %1001 = vrot.lane.b32.xlu0 %v995, 96
    %v1002 = vpop.permute.xlu0 %1001
    %v1003 = vsel %vm186, %v995, 0
    %v1005 = vsel %vm186, %v1002, 0
    %1007 = vmatpush.xpose.msra.mxu0 0.0
    %1008 = vmatpush.xpose.msra.mxu0 0.0
    %1009 = vmatpush.xpose.msra.mxu0 0.0
    %1010 = vmatpush.xpose.msra.mxu0 0.0
    %1011 = vmatpush.xpose.msra.mxu0 0.0
    %1012 = vmatpush.xpose.msra.mxu0 0.0
    %1013 = vmatpush.xpose.msra.mxu0 0.0
    %1014 = vmatpush.xpose.msra.mxu0 0.0
    %1015 = vmatpush.xpose.msra.mxu0 0.0
    %1016 = vmatpush.xpose.msra.mxu0 0.0
    %1017 = vmatpush.xpose.msra.mxu0 0.0
    %1018 = vmatpush.xpose.msra.mxu0 0.0
    %1019 = vmatpush.xpose.msra.mxu0 0.0
    %1020 = vmatpush.xpose.msra.mxu0 0.0
    %1021 = vmatpush.xpose.msra.mxu0 0.0
    %1022 = vmatpush.xpose.msra.mxu0 %v1005
    %1023 = vmatmul.f32.gmra.mxu0 %v1003
    %v1024 = vpop.f32.mrf.mxu0
    %v1025 = vadd.f32 %v144, %v1024
    %1026 = vdwg.mxu0
    %1028 = vrot.lane.b32.xlu0 %v998, 96
    %v1029 = vpop.permute.xlu0 %1028
    %v1030 = vsel %vm186, %v998, 0
    %v1032 = vsel %vm186, %v1029, 0
    %1034 = vmatpush.xpose.msra.mxu0 0.0
    %1035 = vmatpush.xpose.msra.mxu0 0.0
    %1036 = vmatpush.xpose.msra.mxu0 0.0
    %1037 = vmatpush.xpose.msra.mxu0 0.0
    %1038 = vmatpush.xpose.msra.mxu0 0.0
    %1039 = vmatpush.xpose.msra.mxu0 0.0
    %1040 = vmatpush.xpose.msra.mxu0 0.0
    %1041 = vmatpush.xpose.msra.mxu0 0.0
    %1042 = vmatpush.xpose.msra.mxu0 0.0
    %1043 = vmatpush.xpose.msra.mxu0 0.0
    %1044 = vmatpush.xpose.msra.mxu0 0.0
    %1045 = vmatpush.xpose.msra.mxu0 0.0
    %1046 = vmatpush.xpose.msra.mxu0 0.0
    %1047 = vmatpush.xpose.msra.mxu0 0.0
    %1048 = vmatpush.xpose.msra.mxu0 0.0
    %1049 = vmatpush.xpose.msra.mxu0 %v1032
    %1050 = vmatmul.f32.gmra.mxu0 %v1030
    %v1051 = vpop.f32.mrf.mxu0
    %v1052 = vadd.f32 %v145, %v1051
    %1053 = vdwg.mxu0
    %v1054 = vsel %vm186, %v1025, -inf
    %1055 = vmax.xlane.f32.xlu0 %v1054
    %v1056 = vpop.xlane.xlu0 %1055
    %v1057 = vsel %vm186, %v1052, -inf
    %1058 = vmax.xlane.f32.xlu0 %v1057
    %v1059 = vpop.xlane.xlu0 %1058
    %v1060 = vsub.f32 %v1025, %v1056
    %v1061 = vsub.f32 %v1052, %v1059
    %v1062 = vmul.f32 %v1060, 1.442695
    %v1063 = vpow.pop %v1062
    %v1064 = vmul.f32 %v1061, 1.442695
    %v1065 = vpow.pop %v1064
    %v1066 = vsel %vm186, %v1063, 0.0
    %1067 = vadd.xlane.f32.xlu0 %v1066
    %v1068 = vpop.xlane.xlu0 %1067
    %v1069 = vsel %vm186, %v1065, 0.0
    %1070 = vadd.xlane.f32.xlu0 %v1069
    %v1071 = vpop.xlane.xlu0 %1070
    %v1072 = vrcp.pop %v1068
    %v1073 = vrcp.pop %v1071
    %v1074 = vmul.f32 %v1063, %v1072
    %v1075 = vmul.f32 %v1065, %v1073
    %1076 = vrot.lane.b32.xlu0 %v995, 64
    %v1077 = vpop.permute.xlu0 %1076
    %v1080 = vsel %vm186, %v1074, 0
    %1082 = vmatpush.msra.mxu0 0.0
    %1083 = vmatpush.msra.mxu0 0.0
    %1084 = vmatpush.msra.mxu0 0.0
    %1085 = vmatpush.msra.mxu0 0.0
    %1086 = vmatpush.msra.mxu0 0.0
    %1087 = vmatpush.msra.mxu0 0.0
    %1088 = vmatpush.msra.mxu0 0.0
    %1089 = vmatpush.msra.mxu0 0.0
    %1090 = vmatpush.msra.mxu0 0.0
    %1091 = vmatpush.msra.mxu0 0.0
    %1092 = vmatpush.msra.mxu0 0.0
    %1093 = vmatpush.msra.mxu0 0.0
    %1094 = vmatpush.msra.mxu0 0.0
    %1095 = vmatpush.msra.mxu0 0.0
    %1096 = vmatpush.msra.mxu0 0.0
    %1097 = vmatpush.msra.mxu0 %v1077
    %1098 = vmatmul.f32.gmra.mxu0 %v1080
    %v1099 = vpop.f32.mrf.mxu0
    %v1100 = vadd.f32 0.0, %v1099
    %1101 = vdwg.mxu0
    %1102 = vrot.lane.b32.xlu0 %v998, 64
    %v1103 = vpop.permute.xlu0 %1102
    %v1106 = vsel %vm186, %v1075, 0
    %1108 = vmatpush.msra.mxu0 0.0
    %1109 = vmatpush.msra.mxu0 0.0
    %1110 = vmatpush.msra.mxu0 0.0
    %1111 = vmatpush.msra.mxu0 0.0
    %1112 = vmatpush.msra.mxu0 0.0
    %1113 = vmatpush.msra.mxu0 0.0
    %1114 = vmatpush.msra.mxu0 0.0
    %1115 = vmatpush.msra.mxu0 0.0
    %1116 = vmatpush.msra.mxu0 0.0
    %1117 = vmatpush.msra.mxu0 0.0
    %1118 = vmatpush.msra.mxu0 0.0
    %1119 = vmatpush.msra.mxu0 0.0
    %1120 = vmatpush.msra.mxu0 0.0
    %1121 = vmatpush.msra.mxu0 0.0
    %1122 = vmatpush.msra.mxu0 0.0
    %1123 = vmatpush.msra.mxu0 %v1103
    %1124 = vmatmul.f32.gmra.mxu0 %v1106
    %v1125 = vpop.f32.mrf.mxu0
    %v1126 = vadd.f32 0.0, %v1125
    %1127 = vdwg.mxu0
    %1128 = vrot.lane.b32.xlu0 %v995, 120
    %v1129 = vpop.permute.xlu0 %1128
    %1130 = vrot.lane.b32.xlu0 %v995, 88
    %v1131 = vpop.permute.xlu0 %1130
    %v1132 = vsel %vm186, %v1129, 0
    %v1134 = vsel %vm186, %v1131, 0
    %1136 = vmatpush.xpose.msra.mxu0 0.0
    %1137 = vmatpush.xpose.msra.mxu0 0.0
    %1138 = vmatpush.xpose.msra.mxu0 0.0
    %1139 = vmatpush.xpose.msra.mxu0 0.0
    %1140 = vmatpush.xpose.msra.mxu0 0.0
    %1141 = vmatpush.xpose.msra.mxu0 0.0
    %1142 = vmatpush.xpose.msra.mxu0 0.0
    %1143 = vmatpush.xpose.msra.mxu0 0.0
    %1144 = vmatpush.xpose.msra.mxu0 0.0
    %1145 = vmatpush.xpose.msra.mxu0 0.0
    %1146 = vmatpush.xpose.msra.mxu0 0.0
    %1147 = vmatpush.xpose.msra.mxu0 0.0
    %1148 = vmatpush.xpose.msra.mxu0 0.0
    %1149 = vmatpush.xpose.msra.mxu0 0.0
    %1150 = vmatpush.xpose.msra.mxu0 0.0
    %1151 = vmatpush.xpose.msra.mxu0 %v1134
    %1152 = vmatmul.f32.gmra.mxu0 %v1132
    %v1153 = vpop.f32.mrf.mxu0
    %v1154 = vadd.f32 %v144, %v1153
    %1155 = vdwg.mxu0
    %1156 = vrot.lane.b32.xlu0 %v998, 120
    %v1157 = vpop.permute.xlu0 %1156
    %1158 = vrot.lane.b32.xlu0 %v998, 88
    %v1159 = vpop.permute.xlu0 %1158
    %v1160 = vsel %vm186, %v1157, 0
    %v1162 = vsel %vm186, %v1159, 0
    %1164 = vmatpush.xpose.msra.mxu0 0.0
    %1165 = vmatpush.xpose.msra.mxu0 0.0
    %1166 = vmatpush.xpose.msra.mxu0 0.0
    %1167 = vmatpush.xpose.msra.mxu0 0.0
    %1168 = vmatpush.xpose.msra.mxu0 0.0
    %1169 = vmatpush.xpose.msra.mxu0 0.0
    %1170 = vmatpush.xpose.msra.mxu0 0.0
    %1171 = vmatpush.xpose.msra.mxu0 0.0
    %1172 = vmatpush.xpose.msra.mxu0 0.0
    %1173 = vmatpush.xpose.msra.mxu0 0.0
    %1174 = vmatpush.xpose.msra.mxu0 0.0
    %1175 = vmatpush.xpose.msra.mxu0 0.0
    %1176 = vmatpush.xpose.msra.mxu0 0.0
    %1177 = vmatpush.xpose.msra.mxu0 0.0
    %1178 = vmatpush.xpose.msra.mxu0 0.0
    %1179 = vmatpush.xpose.msra.mxu0 %v1162
    %1180 = vmatmul.f32.gmra.mxu0 %v1160
    %v1181 = vpop.f32.mrf.mxu0
    %v1182 = vadd.f32 %v145, %v1181
    %1183 = vdwg.mxu0
    %v1184 = vsel %vm186, %v1154, -inf
    %1185 = vmax.xlane.f32.xlu0 %v1184
    %v1186 = vpop.xlane.xlu0 %1185
    %v1187 = vsel %vm186, %v1182, -inf
    %1188 = vmax.xlane.f32.xlu0 %v1187
    %v1189 = vpop.xlane.xlu0 %1188
    %v1190 = vsub.f32 %v1154, %v1186
    %v1191 = vsub.f32 %v1182, %v1189
    %v1192 = vmul.f32 %v1190, 1.442695
    %v1193 = vpow.pop %v1192
    %v1194 = vmul.f32 %v1191, 1.442695
    %v1195 = vpow.pop %v1194
    %v1196 = vsel %vm186, %v1193, 0.0
    %1197 = vadd.xlane.f32.xlu0 %v1196
    %v1198 = vpop.xlane.xlu0 %1197
    %v1199 = vsel %vm186, %v1195, 0.0
    %1200 = vadd.xlane.f32.xlu0 %v1199
    %v1201 = vpop.xlane.xlu0 %1200
    %v1202 = vrcp.pop %v1198
    %v1203 = vrcp.pop %v1201
    %v1204 = vmul.f32 %v1193, %v1202
    %v1205 = vmul.f32 %v1195, %v1203
    %1206 = vrot.lane.b32.xlu0 %v995, 56
    %v1207 = vpop.permute.xlu0 %1206
    %v1210 = vsel %vm186, %v1204, 0
    %1212 = vmatpush.msra.mxu0 0.0
    %1213 = vmatpush.msra.mxu0 0.0
    %1214 = vmatpush.msra.mxu0 0.0
    %1215 = vmatpush.msra.mxu0 0.0
    %1216 = vmatpush.msra.mxu0 0.0
    %1217 = vmatpush.msra.mxu0 0.0
    %1218 = vmatpush.msra.mxu0 0.0
    %1219 = vmatpush.msra.mxu0 0.0
    %1220 = vmatpush.msra.mxu0 0.0
    %1221 = vmatpush.msra.mxu0 0.0
    %1222 = vmatpush.msra.mxu0 0.0
    %1223 = vmatpush.msra.mxu0 0.0
    %1224 = vmatpush.msra.mxu0 0.0
    %1225 = vmatpush.msra.mxu0 0.0
    %1226 = vmatpush.msra.mxu0 0.0
    %1227 = vmatpush.msra.mxu0 %v1207
    %1228 = vmatmul.f32.gmra.mxu0 %v1210
    %v1229 = vpop.f32.mrf.mxu0
    %v1230 = vadd.f32 0.0, %v1229
    %1231 = vdwg.mxu0
    %1232 = vrot.lane.b32.xlu0 %v998, 56
    %v1233 = vpop.permute.xlu0 %1232
    %v1236 = vsel %vm186, %v1205, 0
    %1238 = vmatpush.msra.mxu0 0.0
    %1239 = vmatpush.msra.mxu0 0.0
    %1240 = vmatpush.msra.mxu0 0.0
    %1241 = vmatpush.msra.mxu0 0.0
    %1242 = vmatpush.msra.mxu0 0.0
    %1243 = vmatpush.msra.mxu0 0.0
    %1244 = vmatpush.msra.mxu0 0.0
    %1245 = vmatpush.msra.mxu0 0.0
    %1246 = vmatpush.msra.mxu0 0.0
    %1247 = vmatpush.msra.mxu0 0.0
    %1248 = vmatpush.msra.mxu0 0.0
    %1249 = vmatpush.msra.mxu0 0.0
    %1250 = vmatpush.msra.mxu0 0.0
    %1251 = vmatpush.msra.mxu0 0.0
    %1252 = vmatpush.msra.mxu0 0.0
    %1253 = vmatpush.msra.mxu0 %v1233
    %1254 = vmatmul.f32.gmra.mxu0 %v1236
    %v1255 = vpop.f32.mrf.mxu0
    %v1256 = vadd.f32 0.0, %v1255
    %1257 = vdwg.mxu0
    %1258 = vrot.lane.b32.xlu0 %v995, 112
    %v1259 = vpop.permute.xlu0 %1258
    %1260 = vrot.lane.b32.xlu0 %v995, 80
    %v1261 = vpop.permute.xlu0 %1260
    %v1262 = vsel %vm186, %v1259, 0
    %v1264 = vsel %vm186, %v1261, 0
    %1266 = vmatpush.xpose.msra.mxu0 0.0
    %1267 = vmatpush.xpose.msra.mxu0 0.0
    %1268 = vmatpush.xpose.msra.mxu0 0.0
    %1269 = vmatpush.xpose.msra.mxu0 0.0
    %1270 = vmatpush.xpose.msra.mxu0 0.0
    %1271 = vmatpush.xpose.msra.mxu0 0.0
    %1272 = vmatpush.xpose.msra.mxu0 0.0
    %1273 = vmatpush.xpose.msra.mxu0 0.0
    %1274 = vmatpush.xpose.msra.mxu0 0.0
    %1275 = vmatpush.xpose.msra.mxu0 0.0
    %1276 = vmatpush.xpose.msra.mxu0 0.0
    %1277 = vmatpush.xpose.msra.mxu0 0.0
    %1278 = vmatpush.xpose.msra.mxu0 0.0
    %1279 = vmatpush.xpose.msra.mxu0 0.0
    %1280 = vmatpush.xpose.msra.mxu0 0.0
    %1281 = vmatpush.xpose.msra.mxu0 %v1264
    %1282 = vmatmul.f32.gmra.mxu0 %v1262
    %v1283 = vpop.f32.mrf.mxu0
    %v1284 = vadd.f32 %v144, %v1283
    %1285 = vdwg.mxu0
    %1286 = vrot.lane.b32.xlu0 %v998, 112
    %v1287 = vpop.permute.xlu0 %1286
    %1288 = vrot.lane.b32.xlu0 %v998, 80
    %v1289 = vpop.permute.xlu0 %1288
    %v1290 = vsel %vm186, %v1287, 0
    %v1292 = vsel %vm186, %v1289, 0
    %1294 = vmatpush.xpose.msra.mxu0 0.0
    %1295 = vmatpush.xpose.msra.mxu0 0.0
    %1296 = vmatpush.xpose.msra.mxu0 0.0
    %1297 = vmatpush.xpose.msra.mxu0 0.0
    %1298 = vmatpush.xpose.msra.mxu0 0.0
    %1299 = vmatpush.xpose.msra.mxu0 0.0
    %1300 = vmatpush.xpose.msra.mxu0 0.0
    %1301 = vmatpush.xpose.msra.mxu0 0.0
    %1302 = vmatpush.xpose.msra.mxu0 0.0
    %1303 = vmatpush.xpose.msra.mxu0 0.0
    %1304 = vmatpush.xpose.msra.mxu0 0.0
    %1305 = vmatpush.xpose.msra.mxu0 0.0
    %1306 = vmatpush.xpose.msra.mxu0 0.0
    %1307 = vmatpush.xpose.msra.mxu0 0.0
    %1308 = vmatpush.xpose.msra.mxu0 0.0
    %1309 = vmatpush.xpose.msra.mxu0 %v1292
    %1310 = vmatmul.f32.gmra.mxu0 %v1290
    %v1311 = vpop.f32.mrf.mxu0
    %v1312 = vadd.f32 %v145, %v1311
    %1313 = vdwg.mxu0
    %v1314 = vsel %vm186, %v1284, -inf
    %1315 = vmax.xlane.f32.xlu0 %v1314
    %v1316 = vpop.xlane.xlu0 %1315
    %v1317 = vsel %vm186, %v1312, -inf
    %1318 = vmax.xlane.f32.xlu0 %v1317
    %v1319 = vpop.xlane.xlu0 %1318
    %v1320 = vsub.f32 %v1284, %v1316
    %v1321 = vsub.f32 %v1312, %v1319
    %v1322 = vmul.f32 %v1320, 1.442695
    %v1323 = vpow.pop %v1322
    %v1324 = vmul.f32 %v1321, 1.442695
    %v1325 = vpow.pop %v1324
    %v1326 = vsel %vm186, %v1323, 0.0
    %1327 = vadd.xlane.f32.xlu0 %v1326
    %v1328 = vpop.xlane.xlu0 %1327
    %v1329 = vsel %vm186, %v1325, 0.0
    %1330 = vadd.xlane.f32.xlu0 %v1329
    %v1331 = vpop.xlane.xlu0 %1330
    %v1332 = vrcp.pop %v1328
    %v1333 = vrcp.pop %v1331
    %v1334 = vmul.f32 %v1323, %v1332
    %v1335 = vmul.f32 %v1325, %v1333
    %1336 = vrot.lane.b32.xlu0 %v995, 48
    %v1337 = vpop.permute.xlu0 %1336
    %v1340 = vsel %vm186, %v1334, 0
    %1342 = vmatpush.msra.mxu0 0.0
    %1343 = vmatpush.msra.mxu0 0.0
    %1344 = vmatpush.msra.mxu0 0.0
    %1345 = vmatpush.msra.mxu0 0.0
    %1346 = vmatpush.msra.mxu0 0.0
    %1347 = vmatpush.msra.mxu0 0.0
    %1348 = vmatpush.msra.mxu0 0.0
    %1349 = vmatpush.msra.mxu0 0.0
    %1350 = vmatpush.msra.mxu0 0.0
    %1351 = vmatpush.msra.mxu0 0.0
    %1352 = vmatpush.msra.mxu0 0.0
    %1353 = vmatpush.msra.mxu0 0.0
    %1354 = vmatpush.msra.mxu0 0.0
    %1355 = vmatpush.msra.mxu0 0.0
    %1356 = vmatpush.msra.mxu0 0.0
    %1357 = vmatpush.msra.mxu0 %v1337
    %1358 = vmatmul.f32.gmra.mxu0 %v1340
    %v1359 = vpop.f32.mrf.mxu0
    %v1360 = vadd.f32 0.0, %v1359
    %1361 = vdwg.mxu0
    %1362 = vrot.lane.b32.xlu0 %v998, 48
    %v1363 = vpop.permute.xlu0 %1362
    %v1366 = vsel %vm186, %v1335, 0
    %1368 = vmatpush.msra.mxu0 0.0
    %1369 = vmatpush.msra.mxu0 0.0
    %1370 = vmatpush.msra.mxu0 0.0
    %1371 = vmatpush.msra.mxu0 0.0
    %1372 = vmatpush.msra.mxu0 0.0
    %1373 = vmatpush.msra.mxu0 0.0
    %1374 = vmatpush.msra.mxu0 0.0
    %1375 = vmatpush.msra.mxu0 0.0
    %1376 = vmatpush.msra.mxu0 0.0
    %1377 = vmatpush.msra.mxu0 0.0
    %1378 = vmatpush.msra.mxu0 0.0
    %1379 = vmatpush.msra.mxu0 0.0
    %1380 = vmatpush.msra.mxu0 0.0
    %1381 = vmatpush.msra.mxu0 0.0
    %1382 = vmatpush.msra.mxu0 0.0
    %1383 = vmatpush.msra.mxu0 %v1363
    %1384 = vmatmul.f32.gmra.mxu0 %v1366
    %v1385 = vpop.f32.mrf.mxu0
    %v1386 = vadd.f32 0.0, %v1385
    %1387 = vdwg.mxu0
    %1388 = vrot.lane.b32.xlu0 %v995, 104
    %v1389 = vpop.permute.xlu0 %1388
    %1390 = vrot.lane.b32.xlu0 %v995, 72
    %v1391 = vpop.permute.xlu0 %1390
    %v1392 = vsel %vm186, %v1389, 0
    %v1394 = vsel %vm186, %v1391, 0
    %1396 = vmatpush.xpose.msra.mxu0 0.0
    %1397 = vmatpush.xpose.msra.mxu0 0.0
    %1398 = vmatpush.xpose.msra.mxu0 0.0
    %1399 = vmatpush.xpose.msra.mxu0 0.0
    %1400 = vmatpush.xpose.msra.mxu0 0.0
    %1401 = vmatpush.xpose.msra.mxu0 0.0
    %1402 = vmatpush.xpose.msra.mxu0 0.0
    %1403 = vmatpush.xpose.msra.mxu0 0.0
    %1404 = vmatpush.xpose.msra.mxu0 0.0
    %1405 = vmatpush.xpose.msra.mxu0 0.0
    %1406 = vmatpush.xpose.msra.mxu0 0.0
    %1407 = vmatpush.xpose.msra.mxu0 0.0
    %1408 = vmatpush.xpose.msra.mxu0 0.0
    %1409 = vmatpush.xpose.msra.mxu0 0.0
    %1410 = vmatpush.xpose.msra.mxu0 0.0
    %1411 = vmatpush.xpose.msra.mxu0 %v1394
    %1412 = vmatmul.f32.gmra.mxu0 %v1392
    %v1413 = vpop.f32.mrf.mxu0
    %v1414 = vadd.f32 %v144, %v1413
    %1415 = vdwg.mxu0
    %1416 = vrot.lane.b32.xlu0 %v998, 104
    %v1417 = vpop.permute.xlu0 %1416
    %1418 = vrot.lane.b32.xlu0 %v998, 72
    %v1419 = vpop.permute.xlu0 %1418
    %v1420 = vsel %vm186, %v1417, 0
    %v1422 = vsel %vm186, %v1419, 0
    %1424 = vmatpush.xpose.msra.mxu0 0.0
    %1425 = vmatpush.xpose.msra.mxu0 0.0
    %1426 = vmatpush.xpose.msra.mxu0 0.0
    %1427 = vmatpush.xpose.msra.mxu0 0.0
    %1428 = vmatpush.xpose.msra.mxu0 0.0
    %1429 = vmatpush.xpose.msra.mxu0 0.0
    %1430 = vmatpush.xpose.msra.mxu0 0.0
    %1431 = vmatpush.xpose.msra.mxu0 0.0
    %1432 = vmatpush.xpose.msra.mxu0 0.0
    %1433 = vmatpush.xpose.msra.mxu0 0.0
    %1434 = vmatpush.xpose.msra.mxu0 0.0
    %1435 = vmatpush.xpose.msra.mxu0 0.0
    %1436 = vmatpush.xpose.msra.mxu0 0.0
    %1437 = vmatpush.xpose.msra.mxu0 0.0
    %1438 = vmatpush.xpose.msra.mxu0 0.0
    %1439 = vmatpush.xpose.msra.mxu0 %v1422
    %1440 = vmatmul.f32.gmra.mxu0 %v1420
    %v1441 = vpop.f32.mrf.mxu0
    %v1442 = vadd.f32 %v145, %v1441
    %1443 = vdwg.mxu0
    %v1444 = vsel %vm186, %v1414, -inf
    %1445 = vmax.xlane.f32.xlu0 %v1444
    %v1446 = vpop.xlane.xlu0 %1445
    %v1447 = vsel %vm186, %v1442, -inf
    %1448 = vmax.xlane.f32.xlu0 %v1447
    %v1449 = vpop.xlane.xlu0 %1448
    %v1450 = vsub.f32 %v1414, %v1446
    %v1451 = vsub.f32 %v1442, %v1449
    %v1452 = vmul.f32 %v1450, 1.442695
    %v1453 = vpow.pop %v1452
    %v1454 = vmul.f32 %v1451, 1.442695
    %v1455 = vpow.pop %v1454
    %v1456 = vsel %vm186, %v1453, 0.0
    %1457 = vadd.xlane.f32.xlu0 %v1456
    %v1458 = vpop.xlane.xlu0 %1457
    %v1459 = vsel %vm186, %v1455, 0.0
    %1460 = vadd.xlane.f32.xlu0 %v1459
    %v1461 = vpop.xlane.xlu0 %1460
    %v1462 = vrcp.pop %v1458
    %v1463 = vrcp.pop %v1461
    %v1464 = vmul.f32 %v1453, %v1462
    %v1465 = vmul.f32 %v1455, %v1463
    %1466 = vrot.lane.b32.xlu0 %v995, 40
    %v1467 = vpop.permute.xlu0 %1466
    %v1470 = vsel %vm186, %v1464, 0
    %1472 = vmatpush.msra.mxu0 0.0
    %1473 = vmatpush.msra.mxu0 0.0
    %1474 = vmatpush.msra.mxu0 0.0
    %1475 = vmatpush.msra.mxu0 0.0
    %1476 = vmatpush.msra.mxu0 0.0
    %1477 = vmatpush.msra.mxu0 0.0
    %1478 = vmatpush.msra.mxu0 0.0
    %1479 = vmatpush.msra.mxu0 0.0
    %1480 = vmatpush.msra.mxu0 0.0
    %1481 = vmatpush.msra.mxu0 0.0
    %1482 = vmatpush.msra.mxu0 0.0
    %1483 = vmatpush.msra.mxu0 0.0
    %1484 = vmatpush.msra.mxu0 0.0
    %1485 = vmatpush.msra.mxu0 0.0
    %1486 = vmatpush.msra.mxu0 0.0
    %1487 = vmatpush.msra.mxu0 %v1467
    %1488 = vmatmul.f32.gmra.mxu0 %v1470
    %v1489 = vpop.f32.mrf.mxu0
    %v1490 = vadd.f32 0.0, %v1489
    %1491 = vdwg.mxu0
    %1492 = vrot.lane.b32.xlu0 %v998, 40
    %v1493 = vpop.permute.xlu0 %1492
    %v1496 = vsel %vm186, %v1465, 0
    %1498 = vmatpush.msra.mxu0 0.0
    %1499 = vmatpush.msra.mxu0 0.0
    %1500 = vmatpush.msra.mxu0 0.0
    %1501 = vmatpush.msra.mxu0 0.0
    %1502 = vmatpush.msra.mxu0 0.0
    %1503 = vmatpush.msra.mxu0 0.0
    %1504 = vmatpush.msra.mxu0 0.0
    %1505 = vmatpush.msra.mxu0 0.0
    %1506 = vmatpush.msra.mxu0 0.0
    %1507 = vmatpush.msra.mxu0 0.0
    %1508 = vmatpush.msra.mxu0 0.0
    %1509 = vmatpush.msra.mxu0 0.0
    %1510 = vmatpush.msra.mxu0 0.0
    %1511 = vmatpush.msra.mxu0 0.0
    %1512 = vmatpush.msra.mxu0 0.0
    %1513 = vmatpush.msra.mxu0 %v1493
    %1514 = vmatmul.f32.gmra.mxu0 %v1496
    %v1515 = vpop.f32.mrf.mxu0
    %v1516 = vadd.f32 0.0, %v1515
    %1517 = vdwg.mxu0
    %1520 = vrot.lane.b32.xlu0 %v1230, 8
    %v1521 = vpop.permute.xlu0 %1520
    %1522 = vrot.lane.b32.xlu0 %v1256, 8
    %v1523 = vpop.permute.xlu0 %1522
    %1528 = vrot.lane.b32.xlu0 %v1360, 16
    %v1529 = vpop.permute.xlu0 %1528
    %1530 = vrot.lane.b32.xlu0 %v1386, 16
    %v1531 = vpop.permute.xlu0 %1530
    %1536 = vrot.lane.b32.xlu0 %v1490, 24
    %v1537 = vpop.permute.xlu0 %1536
    %1538 = vrot.lane.b32.xlu0 %v1516, 24
    %v1539 = vpop.permute.xlu0 %1538
    %v1542 = vsel %vm186, %v1100, %v1521
    %v1543 = vsel %vm186, %v1126, %v1523
    %v1544 = vsel %vm728, %v1542, %v1529
    %v1545 = vsel %vm728, %v1543, %v1531
    %v1546 = vsel %vm731, %v1544, %v1537
    %v1547 = vsel %vm731, %v1545, %v1539
    %s1548 = scalar_lea.vmem [#allocation4], 32
    %v1549 = vld [vmem:[%s1548] sm:$0xff]
    %v1550 = vld [vmem:[%s1548 + $0x8] sm:$0xff]
    %v1551 = vld [vmem:[%s1548 + $0x10] sm:$0xff]
    %v1552 = vld [vmem:[%s1548 + $0x18] sm:$0xff]
    %v1553 = vperm.slane %v964, 1
    %v1555 = vsel %vm82, %v1546, 0
    %v1558 = vsel %vm82, %v1547, 0
    %1560 = vmatpush.msra.mxu0 0.0
    %1561 = vmatpush.msra.mxu0 0.0
    %1562 = vmatpush.msra.mxu0 0.0
    %1563 = vmatpush.msra.mxu0 0.0
    %1564 = vmatpush.msra.mxu0 0.0
    %1565 = vmatpush.msra.mxu0 0.0
    %1566 = vmatpush.msra.mxu0 0.0
    %1567 = vmatpush.msra.mxu0 0.0
    %1568 = vmatpush.msra.mxu0 0.0
    %1569 = vmatpush.msra.mxu0 0.0
    %1570 = vmatpush.msra.mxu0 0.0
    %1571 = vmatpush.msra.mxu0 0.0
    %1572 = vmatpush.msra.mxu0 %v1552
    %1573 = vmatpush.msra.mxu0 %v1551
    %1574 = vmatpush.msra.mxu0 %v1550
    %1575 = vmatpush.msra.mxu0 %v1549
    %1576 = vmatmul.f32.gmra.mxu0 %v1555
    %v1577 = vpop.f32.mrf.mxu0
    %v1578 = vadd.f32 %v1553, %v1577
    %1579 = vmatmul.f32.gmra.mxu0 %v1558
    %v1580 = vpop.f32.mrf.mxu0
    %v1581 = vadd.f32 %v1553, %v1580
    %1582 = vdwg.mxu0
    %v1583 = vadd.f32 %v1578, %v961
    %v1584 = vadd.f32 %v1581, %v962
    %v1585 = vsel %vm82, %v1583, 0.0
    %1586 = vadd.xlane.f32.xlu0 %v1585
    %v1587 = vpop.xlane.xlu0 %1586
    %v1588 = vsel %vm82, %v1584, 0.0
    %1589 = vadd.xlane.f32.xlu0 %v1588
    %v1590 = vpop.xlane.xlu0 %1589
    %v1591 = vmul.f32 %v1587, %v95
    %v1592 = vmul.f32 %v1590, %v95
    %v1593 = vsub.f32 %v1583, %v1591
    %v1594 = vsub.f32 %v1584, %v1592
    %v1595 = vmul.f32 %v1593, %v1593
    %v1596 = vmul.f32 %v1594, %v1594
    %v1597 = vsel %vm82, %v1595, 0.0
    %1598 = vadd.xlane.f32.xlu0 %v1597
    %v1599 = vpop.xlane.xlu0 %1598
    %v1600 = vsel %vm82, %v1596, 0.0
    %1601 = vadd.xlane.f32.xlu0 %v1600
    %v1602 = vpop.xlane.xlu0 %1601
    %v1603 = vmul.f32 %v1599, %v95
    %v1604 = vmul.f32 %v1602, %v95
    %v1605 = vadd.f32 %v1603, 1e-12
    %v1606 = vadd.f32 %v1604, 1e-12
    %v1607 = vrsqrt.pop %v1605
    %v1608 = vmul.f32 %v1607, %v1605
    %v1609 = vmul.f32 %v1608, %v1607
    %v1610 = vmul.f32 0.5, %v1609
    %v1611 = vsub.f32 1.5, %v1610
    %v1612 = vmul.f32 %v1607, %v1611
    %vm1613 = vweird.f32 %v1605
    %vm1614 = vweird.f32 %v1607
    %vm1615 = vmor %vm1613, %vm1614
    %v1616 = vsel %vm1615, %v1607, %v1612
    %v1617 = vrsqrt.pop %v1606
    %v1618 = vmul.f32 %v1617, %v1606
    %v1619 = vmul.f32 %v1618, %v1617
    %v1620 = vmul.f32 0.5, %v1619
    %v1621 = vsub.f32 1.5, %v1620
    %v1622 = vmul.f32 %v1617, %v1621
    %vm1623 = vweird.f32 %v1606
    %vm1624 = vweird.f32 %v1617
    %vm1625 = vmor %vm1623, %vm1624
    %v1626 = vsel %vm1625, %v1617, %v1622
    %v1627 = vmul.f32 %v1593, %v1616
    %v1628 = vmul.f32 %v1594, %v1626
    %v1629 = vperm.slane %v964, 2
    %v1630 = vmul.f32 %v1627, %v1629
    %v1631 = vmul.f32 %v1628, %v1629
    %v1632 = vperm.slane %v964, 3
    %v1633 = vadd.f32 %v1630, %v1632
    %v1634 = vadd.f32 %v1631, %v1632
    %s1635 = scalar_lea.vmem [#allocation6], 32
    %v1636 = vld [vmem:[%s1635] sm:$0xff]
    %v1637 = vld [vmem:[%s1635 + $0x8] sm:$0xff]
    %v1638 = vld [vmem:[%s1635 + $0x10] sm:$0xff]
    %v1639 = vld [vmem:[%s1635 + $0x18] sm:$0xff]
    %v1640 = vperm.slane %v964, 4
    %v1642 = vsel %vm82, %v1633, 0
    %v1645 = vsel %vm82, %v1634, 0
    %1647 = vmatpush.msra.mxu0 0.0
    %1648 = vmatpush.msra.mxu0 0.0
    %1649 = vmatpush.msra.mxu0 0.0
    %1650 = vmatpush.msra.mxu0 0.0
    %1651 = vmatpush.msra.mxu0 0.0
    %1652 = vmatpush.msra.mxu0 0.0
    %1653 = vmatpush.msra.mxu0 0.0
    %1654 = vmatpush.msra.mxu0 0.0
    %1655 = vmatpush.msra.mxu0 0.0
    %1656 = vmatpush.msra.mxu0 0.0
    %1657 = vmatpush.msra.mxu0 0.0
    %1658 = vmatpush.msra.mxu0 0.0
    %1659 = vmatpush.msra.mxu0 %v1639
    %1660 = vmatpush.msra.mxu0 %v1638
    %1661 = vmatpush.msra.mxu0 %v1637
    %1662 = vmatpush.msra.mxu0 %v1636
    %1663 = vmatmul.f32.gmra.mxu0 %v1642
    %v1664 = vpop.f32.mrf.mxu0
    %v1665 = vadd.f32 %v1640, %v1664
    %1666 = vmatmul.f32.gmra.mxu0 %v1645
    %v1667 = vpop.f32.mrf.mxu0
    %v1668 = vadd.f32 %v1640, %v1667
    %1669 = vdwg.mxu0
    %v1670 = vmul.f32 %v1665, %v1665
    %v1671 = vmul.f32 %v1668, %v1668
    %v1672 = vmul.f32 %v1665, %v1670
    %v1673 = vmul.f32 %v1668, %v1671
    %v1674 = vmul.f32 %v1672, 0.044715
    %v1675 = vmul.f32 %v1673, 0.044715
    %v1676 = vadd.f32 %v1665, %v1674
    %v1677 = vadd.f32 %v1668, %v1675
    %v1678 = vmul.f32 %v1676, 0.7978846
    %v1679 = vmul.f32 %v1677, 0.7978846
    %v1680 = vtanh.pop %v1678
    %v1681 = vtanh.pop %v1679
    %v1682 = vadd.f32 %v1680, 1.0
    %v1683 = vadd.f32 %v1681, 1.0
    %v1684 = vmul.f32 %v1682, 0.5
    %v1685 = vmul.f32 %v1683, 0.5
    %v1686 = vmul.f32 %v1665, %v1684
    %v1687 = vmul.f32 %v1668, %v1685
    %s1688 = scalar_lea.vmem %s6, 64
    %v1689 = vld [vmem:[%s1688] sm:$0xff]
    %v1690 = vld [vmem:[%s1688 + $0x8] sm:$0xff]
    %v1691 = vld [vmem:[%s1688 + $0x10] sm:$0xff]
    %v1692 = vld [vmem:[%s1688 + $0x18] sm:$0xff]
    %v1693 = vld [vmem:[%s1688 + $0x20] sm:$0xff]
    %v1694 = vld [vmem:[%s1688 + $0x28] sm:$0xff]
    %v1695 = vld [vmem:[%s1688 + $0x30] sm:$0xff]
    %v1696 = vld [vmem:[%s1688 + $0x38] sm:$0xff]
    %v1697 = vperm.slane %v964, 5
    %v1699 = vsel %vm881, %v1686, 0
    %v1702 = vsel %vm881, %v1687, 0
    %1704 = vmatpush.msra.mxu0 0.0
    %1705 = vmatpush.msra.mxu0 0.0
    %1706 = vmatpush.msra.mxu0 0.0
    %1707 = vmatpush.msra.mxu0 0.0
    %1708 = vmatpush.msra.mxu0 0.0
    %1709 = vmatpush.msra.mxu0 0.0
    %1710 = vmatpush.msra.mxu0 0.0
    %1711 = vmatpush.msra.mxu0 0.0
    %1712 = vmatpush.msra.mxu0 %v1696
    %1713 = vmatpush.msra.mxu0 %v1695
    %1714 = vmatpush.msra.mxu0 %v1694
    %1715 = vmatpush.msra.mxu0 %v1693
    %1716 = vmatpush.msra.mxu0 %v1692
    %1717 = vmatpush.msra.mxu0 %v1691
    %1718 = vmatpush.msra.mxu0 %v1690
    %1719 = vmatpush.msra.mxu0 %v1689
    %1720 = vmatmul.f32.gmra.mxu0 %v1699
    %v1721 = vpop.f32.mrf.mxu0
    %v1722 = vadd.f32 %v1697, %v1721
    %1723 = vmatmul.f32.gmra.mxu0 %v1702
    %v1724 = vpop.f32.mrf.mxu0
    %v1725 = vadd.f32 %v1697, %v1724
    %1726 = vdwg.mxu0
    %v1727 = vadd.f32 %v1722, %v1633
    %v1728 = vadd.f32 %v1725, %v1634
    %v1729 = vsel %vm82, %v1727, 0.0
    %1730 = vadd.xlane.f32.xlu0 %v1729
    %v1731 = vpop.xlane.xlu0 %1730
    %v1732 = vsel %vm82, %v1728, 0.0
    %1733 = vadd.xlane.f32.xlu0 %v1732
    %v1734 = vpop.xlane.xlu0 %1733
    %v1735 = vmul.f32 %v1731, %v95
    %v1736 = vmul.f32 %v1734, %v95
    %v1737 = vsub.f32 %v1727, %v1735
    %v1738 = vsub.f32 %v1728, %v1736
    %v1739 = vmul.f32 %v1737, %v1737
    %v1740 = vmul.f32 %v1738, %v1738
    %v1741 = vsel %vm82, %v1739, 0.0
    %1742 = vadd.xlane.f32.xlu0 %v1741
    %v1743 = vpop.xlane.xlu0 %1742
    %v1744 = vsel %vm82, %v1740, 0.0
    %1745 = vadd.xlane.f32.xlu0 %v1744
    %v1746 = vpop.xlane.xlu0 %1745
    %v1747 = vmul.f32 %v1743, %v95
    %v1748 = vmul.f32 %v1746, %v95
    %v1749 = vadd.f32 %v1747, 1e-12
    %v1750 = vadd.f32 %v1748, 1e-12
    %v1751 = vrsqrt.pop %v1749
    %v1752 = vmul.f32 %v1751, %v1749
    %v1753 = vmul.f32 %v1752, %v1751
    %v1754 = vmul.f32 0.5, %v1753
    %v1755 = vsub.f32 1.5, %v1754
    %v1756 = vmul.f32 %v1751, %v1755
    %vm1757 = vweird.f32 %v1749
    %vm1758 = vweird.f32 %v1751
    %vm1759 = vmor %vm1757, %vm1758
    %v1760 = vsel %vm1759, %v1751, %v1756
    %v1761 = vrsqrt.pop %v1750
    %v1762 = vmul.f32 %v1761, %v1750
    %v1763 = vmul.f32 %v1762, %v1761
    %v1764 = vmul.f32 0.5, %v1763
    %v1765 = vsub.f32 1.5, %v1764
    %v1766 = vmul.f32 %v1761, %v1765
    %vm1767 = vweird.f32 %v1750
    %vm1768 = vweird.f32 %v1761
    %vm1769 = vmor %vm1767, %vm1768
    %v1770 = vsel %vm1769, %v1761, %v1766
    %v1771 = vmul.f32 %v1737, %v1760
    %v1772 = vmul.f32 %v1738, %v1770
    %v1773 = vperm.slane %v964, 6
    %v1774 = vmul.f32 %v1771, %v1773
    %v1775 = vmul.f32 %v1772, %v1773
    %v1776 = vperm.slane %v964, 7
    %v1777 = vadd.f32 %v1774, %v1776
    %v1778 = vadd.f32 %v1775, %v1776
    %v1779 = vld [vmem:[%s8] sm:$0xff]
    %v1780 = vld [vmem:[%s8 + $0x8] sm:$0xff]
    %v1781 = vld [vmem:[%s8 + $0x10] sm:$0xff]
    %v1782 = vld [vmem:[%s8 + $0x18] sm:$0xff]
    %v1783 = vperm.slane %v79, 2
    %v1786 = vrot.slane %v1778, 7
    %vm1787 = vcmask 1041409
    %v1788 = vsel %vm1787, %v1786, %v1777
    %v1789 = vsel %vm82, %v1788, 0
    %1791 = vmatpush.msra.mxu0 0.0
    %1792 = vmatpush.msra.mxu0 0.0
    %1793 = vmatpush.msra.mxu0 0.0
    %1794 = vmatpush.msra.mxu0 0.0
    %1795 = vmatpush.msra.mxu0 0.0
    %1796 = vmatpush.msra.mxu0 0.0
    %1797 = vmatpush.msra.mxu0 0.0
    %1798 = vmatpush.msra.mxu0 0.0
    %1799 = vmatpush.msra.mxu0 0.0
    %1800 = vmatpush.msra.mxu0 0.0
    %1801 = vmatpush.msra.mxu0 0.0
    %1802 = vmatpush.msra.mxu0 0.0
    %1803 = vmatpush.msra.mxu0 %v1782
    %1804 = vmatpush.msra.mxu0 %v1781
    %1805 = vmatpush.msra.mxu0 %v1780
    %1806 = vmatpush.msra.mxu0 %v1779
    %1807 = vmatmul.f32.gmra.mxu0 %v1789
    %v1808 = vpop.f32.mrf.mxu0
    %v1809 = vadd.f32 %v1783, %v1808
    %1810 = vdwg.mxu0
    %v1811 = vtanh.pop %v1809
    %s1812 = scalar_lea.vmem %s8, 32
    %v1813 = vld [vmem:[%s1812] sm:$0xff]
    %v1814 = vld [vmem:[%s1812 + $0x8] sm:$0xff]
    %v1815 = vld [vmem:[%s1812 + $0x10] sm:$0xff]
    %v1816 = vld [vmem:[%s1812 + $0x18] sm:$0xff]
    %v1817 = vperm.slane %v79, 3
    %v1819 = vsel %vm82, %v1811, 0
    %1821 = vmatpush.msra.mxu0 0.0
    %1822 = vmatpush.msra.mxu0 0.0
    %1823 = vmatpush.msra.mxu0 0.0
    %1824 = vmatpush.msra.mxu0 0.0
    %1825 = vmatpush.msra.mxu0 0.0
    %1826 = vmatpush.msra.mxu0 0.0
    %1827 = vmatpush.msra.mxu0 0.0
    %1828 = vmatpush.msra.mxu0 0.0
    %1829 = vmatpush.msra.mxu0 0.0
    %1830 = vmatpush.msra.mxu0 0.0
    %1831 = vmatpush.msra.mxu0 0.0
    %1832 = vmatpush.msra.mxu0 0.0
    %1833 = vmatpush.msra.mxu0 %v1816
    %1834 = vmatpush.msra.mxu0 %v1815
    %1835 = vmatpush.msra.mxu0 %v1814
    %1836 = vmatpush.msra.mxu0 %v1813
    %1837 = vmatmul.f32.gmra.mxu0 %v1819
    %v1838 = vpop.f32.mrf.mxu0
    %v1839 = vadd.f32 %v1817, %v1838
    %1840 = vdwg.mxu0
    %v1841 = vtanh.pop %v1839
    %s1842 = scalar_lea.vmem %s8, 64
    %v1843 = vld [vmem:[%s1842] sm:$0xff]
    %v1844 = vld [vmem:[%s1842 + $0x8] sm:$0xff]
    %v1845 = vld [vmem:[%s1842 + $0x10] sm:$0xff]
    %v1846 = vld [vmem:[%s1842 + $0x18] sm:$0xff]
    %v1847 = vperm.slane %v79, 4
    %v1849 = vsel %vm82, %v1841, 0
    %1851 = vmatpush.msra.mxu0 0.0
    %1852 = vmatpush.msra.mxu0 0.0
    %1853 = vmatpush.msra.mxu0 0.0
    %1854 = vmatpush.msra.mxu0 0.0
    %1855 = vmatpush.msra.mxu0 0.0
    %1856 = vmatpush.msra.mxu0 0.0
    %1857 = vmatpush.msra.mxu0 0.0
    %1858 = vmatpush.msra.mxu0 0.0
    %1859 = vmatpush.msra.mxu0 0.0
    %1860 = vmatpush.msra.mxu0 0.0
    %1861 = vmatpush.msra.mxu0 0.0
    %1862 = vmatpush.msra.mxu0 0.0
    %1863 = vmatpush.msra.mxu0 %v1846
    %1864 = vmatpush.msra.mxu0 %v1845
    %1865 = vmatpush.msra.mxu0 %v1844
    %1866 = vmatpush.msra.mxu0 %v1843
    %1867 = vmatmul.f32.gmra.mxu0 %v1849
    %v1868 = vpop.f32.mrf.mxu0
    %v1869 = vadd.f32 %v1847, %v1868
    %1870 = vdwg.mxu0
    %vm1872 = vcmask 254976
    %1873 = vst.msk [vmem:[%s9] sm:$0x3] %vm1872, %v1788
    %s1874 = scalar_lea.vmem %s9, 2
    %1875 = vst.msk [vmem:[%s1874] sm:$0x3] %vm1872, %v1841
    %s1876 = scalar_lea.vmem %s9, 4
    %1877 = vst.msk [vmem:[%s1876] sm:$0x3] %vm1872, %v1869
    // Predicated region
    $region50: #{text_forward.1} parent=1 // pred_check
      _
    $region51: #{text_forward.1} parent=1 // pred_check_branch
      %1879 = sbr.rel (0) target = $region53
    $region52: #{text_forward.1} parent=1 // pred_region
      _
    $region53: #{text_forward.1} parent=1 // pred_fallthru
      _
    // Predicated region
    $region54: #{text_forward.1} parent=1 // pred_check
      _
    $region55: #{text_forward.1} parent=1 // pred_check_branch
      %1881 = sbr.rel (0) target = $region57
    $region56: #{text_forward.1} parent=1 // pred_region
      _
    $region57: #{text_forward.1} parent=1 // pred_fallthru
      _
    %1882 = vsyncpa [#allocation3], 1
    %1883 = vsyncpa [#allocation5], 1

</llo_original>
